<compile_context>
chip_gen: v7x
topology: tpu7x:2x2x1
jax: 0.10.0
libtpu: 0.0.40
codegen_flags: <defaults>
</compile_context>

<pallas_src>
import jax
import jax.numpy as jnp
from jax.experimental import pallas as pl
from jax.experimental.pallas import tpu as pltpu

_HIGHEST = jax.lax.Precision.HIGHEST


def _round_up(n, m):
    return (n + m - 1) // m * m


# ----------------------------- kernels --------------------------------------


def se_block_kernel_3d(x_ref, w1_ref, b1_ref, w2_ref, b2_ref, o_ref):
    """Main path: x block is (TB, C, HW) with HW a multiple of 128.

    squeeze = lane-axis mean, excite = two tiny MXU matmuls,
    scale = VPU broadcast-multiply.  Purely HBM-bound.
    """
    x = x_ref[...]                                                # (TB, C, HW)
    inv_hw = jnp.float32(1.0) / jnp.float32(x.shape[-1])
    pooled = jnp.sum(x, axis=-1) * inv_hw                         # (TB, C)

    h = jnp.dot(pooled, w1_ref[...], precision=_HIGHEST,
                preferred_element_type=jnp.float32) + b1_ref[...]     # (TB, Cr)
    h = jnp.maximum(h, 0.0)
    s = jnp.dot(h, w2_ref[...], precision=_HIGHEST,
                preferred_element_type=jnp.float32) + b2_ref[...]     # (TB, C)
    s = jax.nn.sigmoid(s)

    o_ref[...] = (x * s[:, :, None]).astype(o_ref.dtype)


def se_block_kernel_2d(x_ref, p_ref, w1_ref, b1_ref, w2_ref, b2_ref, e_ref, o_ref):
    """Fallback for HW < 128: lane-dense (TB, C*HW) slab; pool / gate broadcast
    are matmuls against small constant matrices (only ~C*C*HW*4 bytes each)."""
    x = x_ref[...]                                                # (TB, CHW)
    pooled = jnp.dot(x, p_ref[...], precision=_HIGHEST,
                     preferred_element_type=jnp.float32)          # (TB, C)
    h = jnp.dot(pooled, w1_ref[...], precision=_HIGHEST,
                preferred_element_type=jnp.float32) + b1_ref[...]
    h = jnp.maximum(h, 0.0)
    s = jnp.dot(h, w2_ref[...], precision=_HIGHEST,
                preferred_element_type=jnp.float32) + b2_ref[...]
    s = jax.nn.sigmoid(s)
    gate = jnp.dot(s, e_ref[...], precision=_HIGHEST,
                   preferred_element_type=jnp.float32)            # (TB, CHW)
    o_ref[...] = (x * gate).astype(o_ref.dtype)


# ----------------------------- wrapper ---------------------------------------


def se_block(x, w1, b1, w2, b2, *, batch_tile=None):
    """x: (B, C, H, W) float32.
    w1: (Cr, C), b1: (Cr,), w2: (C, Cr), b2: (C,)  (PyTorch nn.Linear (out, in))."""
    B, C, H, W = x.shape
    Cr = w1.shape[0]
    HW = H * W
    CHW = C * HW

    w1t = w1.T.astype(jnp.float32)                  # (C, Cr)
    w2t = w2.T.astype(jnp.float32)                  # (Cr, C)
    b1r = b1.reshape(1, Cr).astype(jnp.float32)
    b2r = b2.reshape(1, C).astype(jnp.float32)

    use_3d = (HW % 128 == 0)

    # --- batch tiling: 8-aligned tiles, ~4 MiB x-tile target, >= 2 grid steps
    # when the batch allows (v7x megacore).  Double-buffered in+out at this
    # tile size is ~16 MiB, well within v7x's 64 MiB VMEM.
    row_bytes = CHW * 4
    B8 = _round_up(B, 8)
    if batch_tile is not None:
        TB = max(8, _round_up(batch_tile, 8))
    else:
        target_tile_bytes = 4 * 1024 * 1024
        TB = max(8, min(B8, (target_tile_bytes // row_bytes) // 8 * 8))
        if B8 >= 16 and TB >= B8:                   # ensure >= 2 grid steps
            TB = _round_up(B8 // 2, 8)
    B_pad = _round_up(B8, TB)
    num_tiles = B_pad // TB

    # Small resident operands (weights / biases; + constants on fallback path).
    small_bytes = 4 * (2 * C * Cr + C + Cr)
    if not use_3d:
        small_bytes += 4 * 2 * C * CHW
    vmem_need = 4 * TB * row_bytes + 2 * small_bytes + (8 << 20)
    vmem_limit = int(min(64 << 20, max(32 << 20, vmem_need)))

    # Memory-bound cost estimate: ~2 passes over x, tiny excite matmuls.
    flops = 2 * B_pad * CHW + 4 * B_pad * C * Cr
    if not use_3d:
        flops += 4 * B_pad * CHW * C                # pool + expand matmuls
    bytes_accessed = 4 * 2 * B_pad * CHW + 2 * small_bytes
    cost = pl.CostEstimate(flops=int(flops),
                           transcendentals=int(B_pad * C),
                           bytes_accessed=int(bytes_accessed))

    compiler_params = pltpu.CompilerParams(
        dimension_semantics=("parallel",),
        vmem_limit_bytes=vmem_limit,
    )

    if use_3d:
        x3 = x.reshape(B, C, HW)
        if B_pad != B:
            x3 = jnp.pad(x3, ((0, B_pad - B), (0, 0), (0, 0)))
        out3 = pl.pallas_call(
            se_block_kernel_3d,
            out_shape=jax.ShapeDtypeStruct((B_pad, C, HW), x.dtype),
            grid_spec=pltpu.PrefetchScalarGridSpec(
                num_scalar_prefetch=0,
                grid=(num_tiles,),
                in_specs=[
                    pl.BlockSpec((TB, C, HW), lambda b: (b, 0, 0)),   # x tile
                    pl.BlockSpec((C, Cr), lambda b: (0, 0)),          # w1^T
                    pl.BlockSpec((1, Cr), lambda b: (0, 0)),          # b1
                    pl.BlockSpec((Cr, C), lambda b: (0, 0)),          # w2^T
                    pl.BlockSpec((1, C), lambda b: (0, 0)),           # b2
                ],
                out_specs=pl.BlockSpec((TB, C, HW), lambda b: (b, 0, 0)),
            ),
            compiler_params=compiler_params,
            cost_estimate=cost,
        )(x3, w1t, b1r, w2t, b2r)
        return out3[:B].reshape(B, C, H, W)

    # ---------- fallback: HW < 128 -> lane-dense 2-D slab + constant matmuls
    x2 = x.reshape(B, CHW)
    if B_pad != B:
        x2 = jnp.pad(x2, ((0, B_pad - B), (0, 0)))
    eye_c = jnp.eye(C, dtype=jnp.float32)
    pool_mat = jnp.repeat(eye_c, HW, axis=0) / jnp.float32(HW)    # (CHW, C)
    expand_mat = jnp.repeat(eye_c, HW, axis=1)                    # (C, CHW)

    out2 = pl.pallas_call(
        se_block_kernel_2d,
        out_shape=jax.ShapeDtypeStruct((B_pad, CHW), x.dtype),
        grid_spec=pltpu.PrefetchScalarGridSpec(
            num_scalar_prefetch=0,
            grid=(num_tiles,),
            in_specs=[
                pl.BlockSpec((TB, CHW), lambda b: (b, 0)),   # x batch tile
                pl.BlockSpec((CHW, C), lambda b: (0, 0)),    # pool matrix
                pl.BlockSpec((C, Cr), lambda b: (0, 0)),     # w1^T
                pl.BlockSpec((1, Cr), lambda b: (0, 0)),     # b1
                pl.BlockSpec((Cr, C), lambda b: (0, 0)),     # w2^T
                pl.BlockSpec((1, C), lambda b: (0, 0)),      # b2
                pl.BlockSpec((C, CHW), lambda b: (0, 0)),    # expand matrix
            ],
            out_specs=pl.BlockSpec((TB, CHW), lambda b: (b, 0)),
        ),
        compiler_params=compiler_params,
        cost_estimate=cost,
    )(x2, pool_mat, w1t, b1r, w2t, b2r, expand_mat)
    return out2[:B].reshape(B, C, H, W)


# ----------------------------- reference -------------------------------------


def se_block_ref(x, w1, b1, w2, b2):
    """Pure-JAX reference mirroring the PyTorch forward (f32 math)."""
    pooled = jnp.mean(x, axis=(2, 3))                                   # (B, C)
    h = jnp.maximum(jnp.dot(pooled, w1.T, precision=_HIGHEST) + b1, 0.0)
    s = jax.nn.sigmoid(jnp.dot(h, w2.T, precision=_HIGHEST) + b2)       # (B, C)
    return x * s[:, :, None, None]


if __name__ == "__main__":
    def run_case(B, C, H, W, reduction):
        Cr = max(1, C // reduction)
        key = jax.random.PRNGKey(0)
        kx, k1, k2, k3, k4 = jax.random.split(key, 5)
        x = jax.random.normal(kx, (B, C, H, W), dtype=jnp.float32)
        w1 = jax.random.normal(k1, (Cr, C), dtype=jnp.float32) * 0.1
        b1 = jax.random.normal(k2, (Cr,), dtype=jnp.float32) * 0.1
        w2 = jax.random.normal(k3, (C, Cr), dtype=jnp.float32) * 0.1
        b2 = jax.random.normal(k4, (C,), dtype=jnp.float32) * 0.1

        out = jax.block_until_ready(se_block(x, w1, b1, w2, b2))
        ref = se_block_ref(x, w1, b1, w2, b2)
        assert out.shape == x.shape
        assert jnp.allclose(out, ref, atol=1e-5, rtol=1e-5), \
            f"mismatch vs reference for shape {(B, C, H, W)}"

    # Main path: HW = 256 (multiple of 128) -> 3-D lane-dense layout.
    run_case(B=2, C=32, H=16, W=16, reduction=16)
    # Fallback path: HW = 64 (< 128) -> constant-matrix 2-D path, with a batch
    # that is not a multiple of 8 (exercises the batch-padding logic).
    run_case(B=3, C=16, H=8, W=8, reduction=8)

    print("KERNEL_OK")
</pallas_src>

<mosaic_0001>
module attributes {stable_mosaic.version = 11 : i64} {
  func.func @se_block_kernel_3d(%arg0: i32, %arg1: memref<8x32x256xf32, #tpu.memory_space<vmem>>, %arg2: memref<32x2xf32, #tpu.memory_space<vmem>>, %arg3: memref<1x2xf32, #tpu.memory_space<vmem>>, %arg4: memref<2x32xf32, #tpu.memory_space<vmem>>, %arg5: memref<1x32xf32, #tpu.memory_space<vmem>>, %arg6: memref<8x32x256xf32, #tpu.memory_space<vmem>>) attributes {dimension_semantics = [#tpu.dimension_semantics<parallel>], iteration_bounds = array<i64: 1>, scalar_prefetch = 0 : i64, scratch_operands = 0 : i64, tpu.core_type = #tpu.core_type<tc>, window_params = [{transform_indices = @transform_0, window_bounds = array<i64: 8, 32, 256>}, {pipeline_mode = #tpu.pipeline_mode<synchronous>, transform_indices = @transform_1, window_bounds = array<i64: 32, 2>}, {pipeline_mode = #tpu.pipeline_mode<synchronous>, transform_indices = @transform_2, window_bounds = array<i64: 1, 2>}, {pipeline_mode = #tpu.pipeline_mode<synchronous>, transform_indices = @transform_3, window_bounds = array<i64: 2, 32>}, {pipeline_mode = #tpu.pipeline_mode<synchronous>, transform_indices = @transform_4, window_bounds = array<i64: 1, 32>}, {transform_indices = @transform_5, window_bounds = array<i64: 8, 32, 256>}]} {
    %c0 = arith.constant 0 : index
    %c0_0 = arith.constant 0 : index
    %c0_1 = arith.constant 0 : index
    %0 = vector.load %arg1[%c0, %c0_0, %c0_1] : memref<8x32x256xf32, #tpu.memory_space<vmem>>, vector<8x32x256xf32>
    %cst = arith.constant 1.000000e+00 : f32
    %cst_2 = arith.constant 2.560000e+02 : f32
    %1 = arith.divf %cst, %cst_2 : f32
    %cst_3 = arith.constant dense<0.000000e+00> : vector<8x32xf32>
    %2 = vector.multi_reduction <add>, %0, %cst_3 [2] : vector<8x32x256xf32> to vector<8x32xf32>
    %3 = vector.broadcast %1 : f32 to vector<8x32xf32>
    %4 = arith.mulf %2, %3 : vector<8x32xf32>
    %c0_4 = arith.constant 0 : index
    %c0_5 = arith.constant 0 : index
    %5 = vector.load %arg2[%c0_4, %c0_5] : memref<32x2xf32, #tpu.memory_space<vmem>>, vector<32x2xf32>
    %cst_6 = arith.constant dense<0.000000e+00> : vector<8x2xf32>
    %6 = tpu.matmul %4, %5, %cst_6 {dimension_numbers = #tpu.dot_dimension_numbers<[1], [0], [0], [1], [0, 0, 1, 1], [], []>, precision = #tpu.contract_precision<fp32>} : vector<8x32xf32>, vector<32x2xf32>, vector<8x2xf32> -> vector<8x2xf32>
    %c0_7 = arith.constant 0 : index
    %c0_8 = arith.constant 0 : index
    %7 = vector.load %arg3[%c0_7, %c0_8] : memref<1x2xf32, #tpu.memory_space<vmem>>, vector<1x2xf32>
    %8 = vector.broadcast %7 : vector<1x2xf32> to vector<8x2xf32>
    %9 = arith.addf %6, %8 : vector<8x2xf32>
    %cst_9 = arith.constant 0.000000e+00 : f32
    %10 = vector.broadcast %cst_9 : f32 to vector<8x2xf32>
    %11 = arith.maximumf %9, %10 : vector<8x2xf32>
    %c0_10 = arith.constant 0 : index
    %c0_11 = arith.constant 0 : index
    %12 = vector.load %arg4[%c0_10, %c0_11] : memref<2x32xf32, #tpu.memory_space<vmem>>, vector<2x32xf32>
    %cst_12 = arith.constant dense<0.000000e+00> : vector<8x32xf32>
    %13 = tpu.matmul %11, %12, %cst_12 {dimension_numbers = #tpu.dot_dimension_numbers<[1], [0], [0], [1], [0, 0, 1, 1], [], []>, precision = #tpu.contract_precision<fp32>} : vector<8x2xf32>, vector<2x32xf32>, vector<8x32xf32> -> vector<8x32xf32>
    %c0_13 = arith.constant 0 : index
    %c0_14 = arith.constant 0 : index
    %14 = vector.load %arg5[%c0_13, %c0_14] : memref<1x32xf32, #tpu.memory_space<vmem>>, vector<1x32xf32>
    %15 = vector.broadcast %14 : vector<1x32xf32> to vector<8x32xf32>
    %16 = arith.addf %13, %15 : vector<8x32xf32>
    %17 = arith.negf %16 : vector<8x32xf32>
    %18 = math.exp %17 : vector<8x32xf32>
    %cst_15 = arith.constant 1.000000e+00 : f32
    %19 = vector.broadcast %cst_15 : f32 to vector<8x32xf32>
    %20 = arith.addf %19, %18 : vector<8x32xf32>
    %21 = arith.divf %19, %20 : vector<8x32xf32>
    %22 = vector.shape_cast %21 : vector<8x32xf32> to vector<8x32x1xf32>
    %23 = vector.broadcast %22 : vector<8x32x1xf32> to vector<8x32x256xf32>
    %24 = arith.mulf %0, %23 : vector<8x32x256xf32>
    %c0_16 = arith.constant 0 : index
    %c0_17 = arith.constant 0 : index
    %c0_18 = arith.constant 0 : index
    %25 = vector.load %arg6[%c0_16, %c0_17, %c0_18] : memref<8x32x256xf32, #tpu.memory_space<vmem>>, vector<8x32x256xf32>
    tpu.vector_store %arg6[%c0_16, %c0_17, %c0_18], %24 {strides = array<i32>} : memref<8x32x256xf32, #tpu.memory_space<vmem>>, vector<8x32x256xf32>,
    return
  }
  func.func @transform_0(%arg0: i32) -> (i32, i32, i32) {
    %c0_i32 = arith.constant 0 : i32
    %c0_i32_0 = arith.constant 0 : i32
    %c0_i32_1 = arith.constant 0 : i32
    return %arg0, %c0_i32, %c0_i32_0 : i32, i32, i32
  }
  func.func @transform_1(%arg0: i32) -> (i32, i32) {
    %c0_i32 = arith.constant 0 : i32
    %c0_i32_0 = arith.constant 0 : i32
    %c0_i32_1 = arith.constant 0 : i32
    return %c0_i32, %c0_i32_0 : i32, i32
  }
  func.func @transform_2(%arg0: i32) -> (i32, i32) {
    %c0_i32 = arith.constant 0 : i32
    %c0_i32_0 = arith.constant 0 : i32
    %c0_i32_1 = arith.constant 0 : i32
    return %c0_i32, %c0_i32_0 : i32, i32
  }
  func.func @transform_3(%arg0: i32) -> (i32, i32) {
    %c0_i32 = arith.constant 0 : i32
    %c0_i32_0 = arith.constant 0 : i32
    %c0_i32_1 = arith.constant 0 : i32
    return %c0_i32, %c0_i32_0 : i32, i32
  }
  func.func @transform_4(%arg0: i32) -> (i32, i32) {
    %c0_i32 = arith.constant 0 : i32
    %c0_i32_0 = arith.constant 0 : i32
    %c0_i32_1 = arith.constant 0 : i32
    return %c0_i32, %c0_i32_0 : i32, i32
  }
  func.func @transform_5(%arg0: i32) -> (i32, i32, i32) {
    %c0_i32 = arith.constant 0 : i32
    %c0_i32_0 = arith.constant 0 : i32
    %c0_i32_1 = arith.constant 0 : i32
    return %arg0, %c0_i32, %c0_i32_0 : i32, i32, i32
  }
}

</mosaic_0001>

<llo_original>
// kernel: tpu_custom_call.1
$region0: #{tpu_custom_call.1}
  #allocation0 [shape = 'u32[]', space=smem, size = 0x4, offset = 0x4, fixed_abs, tag = 'smem constant byte address 0x4 - core index']
  #allocation1 [shape = 'u32[144,128]{1,0:T(1,128)}', space=vmem, size = 0x12000, scoped, tag = 'internal scratch']
  %s0 = inlined_call_operand.hbm [shape: f32[8,32,256], index: 0, kind: input, shape index: {}]
  %s1 = inlined_call_operand.vmem [shape: f32[32,2], index: 1, kind: input, shape index: {}]
  %s2 = inlined_call_operand.vmem [shape: f32[1,2], index: 2, kind: input, shape index: {}]
  %s3 = inlined_call_operand.vmem [shape: f32[2,32], index: 3, kind: input, shape index: {}]
  %s4 = inlined_call_operand.vmem [shape: f32[1,32], index: 4, kind: input, shape index: {}]
  %s5 = inlined_call_operand.hbm [shape: f32[8,32,256], index: 5, kind: output, shape index: {}]
  %s6 = sld [smem:[#allocation0]]
  $region34: #{tpu_custom_call.1} parent=0
    _
  %s8 = ssub.s32 1, %s6
  %s9 = scalar_select 0, %s8, %s6
  $region1: #{tpu_custom_call.1} parent=0
    #allocation2 [shape = 'u8[262144]{0}', space=vmem, size = 0x40000, scoped, tag = 'input window, operand 0, single buffered']
    #allocation3 [shape = 's32[1]{0}', space=sflag, size = 0x4, scoped, tag = 'scoped memory for tpu_custom_call.1']
    #allocation4 [shape = 's32[1]{0}', space=sflag, size = 0x4, scoped, tag = 'scoped memory for tpu_custom_call.1']
    #allocation5 [shape = 'u8[262144]{0}', space=vmem, size = 0x40000, scoped, tag = 'output window, operand 0, single buffered']
    %10 = vsyncpa [#allocation3], 0
    %11 = vsyncpa [#allocation4], 0
    // Predicated region
    $region2: #{tpu_custom_call.1} parent=1 // pred_check
      _
    $region3: #{tpu_custom_call.1} parent=1 // pred_check_branch
      %13 = sbr.rel (0) target = $region5
    $region4: #{tpu_custom_call.1} parent=1 // pred_region
      %s15 = ssub.s32 8192, 8192
      %16 = vsyncadd [#allocation3], %s15
      %s17 = sshll.u32 [#allocation2], 4
      %s18 = int_to_ptr.vmem [resolvable:$true] %s17
      %23 = dma.hbm_to_vmem [thread:$0]  %s0, 8192, %s18, [#allocation3], 256, 256, 16
    $region5: #{tpu_custom_call.1} parent=1 // pred_fallthru
      _
    // Predicated region
    $region6: #{tpu_custom_call.1} parent=1 // pred_check
      _
    $region7: #{tpu_custom_call.1} parent=1 // pred_check_branch
      %25 = sbr.rel (0) target = $region9
    $region8: #{tpu_custom_call.1} parent=1 // pred_region
      _
    $region9: #{tpu_custom_call.1} parent=1 // pred_fallthru
      _
    // Predicated region
    $region10: #{tpu_custom_call.1} parent=1 // pred_check
      _
    $region11: #{tpu_custom_call.1} parent=1 // pred_check_branch
      %27 = sbr.rel (0) target = $region13
    $region12: #{tpu_custom_call.1} parent=1 // pred_region
      _
    $region13: #{tpu_custom_call.1} parent=1 // pred_fallthru
      _
    // Predicated region
    $region14: #{tpu_custom_call.1} parent=1 // pred_check
      _
    $region15: #{tpu_custom_call.1} parent=1 // pred_check_branch
      %29 = sbr.rel (0) target = $region17
    $region16: #{tpu_custom_call.1} parent=1 // pred_region
      _
    $region17: #{tpu_custom_call.1} parent=1 // pred_fallthru
      _
    // Predicated region
    $region18: #{tpu_custom_call.1} parent=1 // pred_check
      _
    $region19: #{tpu_custom_call.1} parent=1 // pred_check_branch
      %31 = sbr.rel (0) target = $region21
    $region20: #{tpu_custom_call.1} parent=1 // pred_region
      _
    $region21: #{tpu_custom_call.1} parent=1 // pred_fallthru
      _
    // Predicated region
    $region22: #{tpu_custom_call.1} parent=1 // pred_check
      _
    $region23: #{tpu_custom_call.1} parent=1 // pred_check_branch
      %33 = sbr.rel (0) target = $region25
    $region24: #{tpu_custom_call.1} parent=1 // pred_region
      %34 = dma.done [#allocation3], 8192
    $region25: #{tpu_custom_call.1} parent=1 // pred_fallthru
      _
    %v35 = vld [vmem:[#allocation2] sm:$0xff]
    %v36 = vld [vmem:[#allocation2 + $0x8] sm:$0xff]
    %v37 = vld [vmem:[#allocation2 + $0x10] sm:$0xff]
    %v38 = vld [vmem:[#allocation2 + $0x18] sm:$0xff]
    %v39 = vld [vmem:[#allocation2 + $0x20] sm:$0xff]
    %v40 = vld [vmem:[#allocation2 + $0x28] sm:$0xff]
    %v41 = vld [vmem:[#allocation2 + $0x30] sm:$0xff]
    %v42 = vld [vmem:[#allocation2 + $0x38] sm:$0xff]
    %v43 = vld [vmem:[#allocation2 + $0x40] sm:$0xff]
    %v44 = vld [vmem:[#allocation2 + $0x48] sm:$0xff]
    %v45 = vld [vmem:[#allocation2 + $0x50] sm:$0xff]
    %v46 = vld [vmem:[#allocation2 + $0x58] sm:$0xff]
    %v47 = vld [vmem:[#allocation2 + $0x60] sm:$0xff]
    %v48 = vld [vmem:[#allocation2 + $0x68] sm:$0xff]
    %v49 = vld [vmem:[#allocation2 + $0x70] sm:$0xff]
    %v50 = vld [vmem:[#allocation2 + $0x78] sm:$0xff]
    %v51 = vld [vmem:[#allocation2 + $0x80] sm:$0xff]
    %v52 = vld [vmem:[#allocation2 + $0x88] sm:$0xff]
    %v53 = vld [vmem:[#allocation2 + $0x90] sm:$0xff]
    %v54 = vld [vmem:[#allocation2 + $0x98] sm:$0xff]
    %v55 = vld [vmem:[#allocation2 + $0xa0] sm:$0xff]
    %v56 = vld [vmem:[#allocation2 + $0xa8] sm:$0xff]
    %v57 = vld [vmem:[#allocation2 + $0xb0] sm:$0xff]
    %v58 = vld [vmem:[#allocation2 + $0xb8] sm:$0xff]
    %v59 = vld [vmem:[#allocation2 + $0xc0] sm:$0xff]
    %v60 = vld [vmem:[#allocation2 + $0xc8] sm:$0xff]
    %v61 = vld [vmem:[#allocation2 + $0xd0] sm:$0xff]
    %v62 = vld [vmem:[#allocation2 + $0xd8] sm:$0xff]
    %v63 = vld [vmem:[#allocation2 + $0xe0] sm:$0xff]
    %v64 = vld [vmem:[#allocation2 + $0xe8] sm:$0xff]
    %v65 = vld [vmem:[#allocation2 + $0xf0] sm:$0xff]
    %v66 = vld [vmem:[#allocation2 + $0xf8] sm:$0xff]
    %v67 = vld [vmem:[#allocation2 + $0x100] sm:$0xff]
    %v68 = vld [vmem:[#allocation2 + $0x108] sm:$0xff]
    %v69 = vld [vmem:[#allocation2 + $0x110] sm:$0xff]
    %v70 = vld [vmem:[#allocation2 + $0x118] sm:$0xff]
    %v71 = vld [vmem:[#allocation2 + $0x120] sm:$0xff]
    %v72 = vld [vmem:[#allocation2 + $0x128] sm:$0xff]
    %v73 = vld [vmem:[#allocation2 + $0x130] sm:$0xff]
    %v74 = vld [vmem:[#allocation2 + $0x138] sm:$0xff]
    %v75 = vld [vmem:[#allocation2 + $0x140] sm:$0xff]
    %v76 = vld [vmem:[#allocation2 + $0x148] sm:$0xff]
    %v77 = vld [vmem:[#allocation2 + $0x150] sm:$0xff]
    %v78 = vld [vmem:[#allocation2 + $0x158] sm:$0xff]
    %v79 = vld [vmem:[#allocation2 + $0x160] sm:$0xff]
    %v80 = vld [vmem:[#allocation2 + $0x168] sm:$0xff]
    %v81 = vld [vmem:[#allocation2 + $0x170] sm:$0xff]
    %v82 = vld [vmem:[#allocation2 + $0x178] sm:$0xff]
    %v83 = vld [vmem:[#allocation2 + $0x180] sm:$0xff]
    %v84 = vld [vmem:[#allocation2 + $0x188] sm:$0xff]
    %v85 = vld [vmem:[#allocation2 + $0x190] sm:$0xff]
    %v86 = vld [vmem:[#allocation2 + $0x198] sm:$0xff]
    %v87 = vld [vmem:[#allocation2 + $0x1a0] sm:$0xff]
    %v88 = vld [vmem:[#allocation2 + $0x1a8] sm:$0xff]
    %v89 = vld [vmem:[#allocation2 + $0x1b0] sm:$0xff]
    %v90 = vld [vmem:[#allocation2 + $0x1b8] sm:$0xff]
    %v91 = vld [vmem:[#allocation2 + $0x1c0] sm:$0xff]
    %v92 = vld [vmem:[#allocation2 + $0x1c8] sm:$0xff]
    %v93 = vld [vmem:[#allocation2 + $0x1d0] sm:$0xff]
    %v94 = vld [vmem:[#allocation2 + $0x1d8] sm:$0xff]
    %v95 = vld [vmem:[#allocation2 + $0x1e0] sm:$0xff]
    %v96 = vld [vmem:[#allocation2 + $0x1e8] sm:$0xff]
    %v97 = vld [vmem:[#allocation2 + $0x1f0] sm:$0xff]
    %v98 = vld [vmem:[#allocation2 + $0x1f8] sm:$0xff]
    %v99 = vadd.f32 %v35, %v36
    %100 = vadd.xlane.f32.xlu0 %v99
    %v101 = vpop.xlane.xlu0 %100
    %v102 = vadd.f32 %v37, %v38
    %103 = vadd.xlane.f32.xlu0 %v102
    %v104 = vpop.xlane.xlu0 %103
    %v105 = vadd.f32 %v39, %v40
    %106 = vadd.xlane.f32.xlu0 %v105
    %v107 = vpop.xlane.xlu0 %106
    %v108 = vadd.f32 %v41, %v42
    %109 = vadd.xlane.f32.xlu0 %v108
    %v110 = vpop.xlane.xlu0 %109
    %v111 = vadd.f32 %v43, %v44
    %112 = vadd.xlane.f32.xlu0 %v111
    %v113 = vpop.xlane.xlu0 %112
    %v114 = vadd.f32 %v45, %v46
    %115 = vadd.xlane.f32.xlu0 %v114
    %v116 = vpop.xlane.xlu0 %115
    %v117 = vadd.f32 %v47, %v48
    %118 = vadd.xlane.f32.xlu0 %v117
    %v119 = vpop.xlane.xlu0 %118
    %v120 = vadd.f32 %v49, %v50
    %121 = vadd.xlane.f32.xlu0 %v120
    %v122 = vpop.xlane.xlu0 %121
    %v123 = vadd.f32 %v51, %v52
    %124 = vadd.xlane.f32.xlu0 %v123
    %v125 = vpop.xlane.xlu0 %124
    %v126 = vadd.f32 %v53, %v54
    %127 = vadd.xlane.f32.xlu0 %v126
    %v128 = vpop.xlane.xlu0 %127
    %v129 = vadd.f32 %v55, %v56
    %130 = vadd.xlane.f32.xlu0 %v129
    %v131 = vpop.xlane.xlu0 %130
    %v132 = vadd.f32 %v57, %v58
    %133 = vadd.xlane.f32.xlu0 %v132
    %v134 = vpop.xlane.xlu0 %133
    %v135 = vadd.f32 %v59, %v60
    %136 = vadd.xlane.f32.xlu0 %v135
    %v137 = vpop.xlane.xlu0 %136
    %v138 = vadd.f32 %v61, %v62
    %139 = vadd.xlane.f32.xlu0 %v138
    %v140 = vpop.xlane.xlu0 %139
    %v141 = vadd.f32 %v63, %v64
    %142 = vadd.xlane.f32.xlu0 %v141
    %v143 = vpop.xlane.xlu0 %142
    %v144 = vadd.f32 %v65, %v66
    %145 = vadd.xlane.f32.xlu0 %v144
    %v146 = vpop.xlane.xlu0 %145
    %v147 = vadd.f32 %v67, %v68
    %148 = vadd.xlane.f32.xlu0 %v147
    %v149 = vpop.xlane.xlu0 %148
    %v150 = vadd.f32 %v69, %v70
    %151 = vadd.xlane.f32.xlu0 %v150
    %v152 = vpop.xlane.xlu0 %151
    %v153 = vadd.f32 %v71, %v72
    %154 = vadd.xlane.f32.xlu0 %v153
    %v155 = vpop.xlane.xlu0 %154
    %v156 = vadd.f32 %v73, %v74
    %157 = vadd.xlane.f32.xlu0 %v156
    %v158 = vpop.xlane.xlu0 %157
    %v159 = vadd.f32 %v75, %v76
    %160 = vadd.xlane.f32.xlu0 %v159
    %v161 = vpop.xlane.xlu0 %160
    %v162 = vadd.f32 %v77, %v78
    %163 = vadd.xlane.f32.xlu0 %v162
    %v164 = vpop.xlane.xlu0 %163
    %v165 = vadd.f32 %v79, %v80
    %166 = vadd.xlane.f32.xlu0 %v165
    %v167 = vpop.xlane.xlu0 %166
    %v168 = vadd.f32 %v81, %v82
    %169 = vadd.xlane.f32.xlu0 %v168
    %v170 = vpop.xlane.xlu0 %169
    %v171 = vadd.f32 %v83, %v84
    %172 = vadd.xlane.f32.xlu0 %v171
    %v173 = vpop.xlane.xlu0 %172
    %v174 = vadd.f32 %v85, %v86
    %175 = vadd.xlane.f32.xlu0 %v174
    %v176 = vpop.xlane.xlu0 %175
    %v177 = vadd.f32 %v87, %v88
    %178 = vadd.xlane.f32.xlu0 %v177
    %v179 = vpop.xlane.xlu0 %178
    %v180 = vadd.f32 %v89, %v90
    %181 = vadd.xlane.f32.xlu0 %v180
    %v182 = vpop.xlane.xlu0 %181
    %v183 = vadd.f32 %v91, %v92
    %184 = vadd.xlane.f32.xlu0 %v183
    %v185 = vpop.xlane.xlu0 %184
    %v186 = vadd.f32 %v93, %v94
    %187 = vadd.xlane.f32.xlu0 %v186
    %v188 = vpop.xlane.xlu0 %187
    %v189 = vadd.f32 %v95, %v96
    %190 = vadd.xlane.f32.xlu0 %v189
    %v191 = vpop.xlane.xlu0 %190
    %v192 = vadd.f32 %v97, %v98
    %193 = vadd.xlane.f32.xlu0 %v192
    %v194 = vpop.xlane.xlu0 %193
    %v195 = vmul.f32 %v101, 0.00390625
    %v196 = vmul.f32 %v104, 0.00390625
    %v197 = vmul.f32 %v107, 0.00390625
    %v198 = vmul.f32 %v110, 0.00390625
    %v199 = vmul.f32 %v113, 0.00390625
    %v200 = vmul.f32 %v116, 0.00390625
    %v201 = vmul.f32 %v119, 0.00390625
    %v202 = vmul.f32 %v122, 0.00390625
    %v203 = vmul.f32 %v125, 0.00390625
    %v204 = vmul.f32 %v128, 0.00390625
    %v205 = vmul.f32 %v131, 0.00390625
    %v206 = vmul.f32 %v134, 0.00390625
    %v207 = vmul.f32 %v137, 0.00390625
    %v208 = vmul.f32 %v140, 0.00390625
    %v209 = vmul.f32 %v143, 0.00390625
    %v210 = vmul.f32 %v146, 0.00390625
    %v211 = vmul.f32 %v149, 0.00390625
    %v212 = vmul.f32 %v152, 0.00390625
    %v213 = vmul.f32 %v155, 0.00390625
    %v214 = vmul.f32 %v158, 0.00390625
    %v215 = vmul.f32 %v161, 0.00390625
    %v216 = vmul.f32 %v164, 0.00390625
    %v217 = vmul.f32 %v167, 0.00390625
    %v218 = vmul.f32 %v170, 0.00390625
    %v219 = vmul.f32 %v173, 0.00390625
    %v220 = vmul.f32 %v176, 0.00390625
    %v221 = vmul.f32 %v179, 0.00390625
    %v222 = vmul.f32 %v182, 0.00390625
    %v223 = vmul.f32 %v185, 0.00390625
    %v224 = vmul.f32 %v188, 0.00390625
    %v225 = vmul.f32 %v191, 0.00390625
    %v226 = vmul.f32 %v194, 0.00390625
    %v227 = vld [vmem:[%s1] sm:$0xff]
    %v228 = vld [vmem:[%s1 + $0x8] sm:$0xff]
    %v229 = vld [vmem:[%s1 + $0x10] sm:$0xff]
    %v230 = vld [vmem:[%s1 + $0x18] sm:$0xff]
    %v231 = vld [vmem:[%s2] sm:$0x1]
    %v233 = vlaneseq
    %v234 = vshrl.u32 %v233, 7
    %v235 = vsub.s32 0, %v234
    %v236 = vrot.slane %v231, %v235
    %v270 = vlaneseq
    %v271 = vand.u32 %v270, 127
    %v272 = vlaneseq
    %v273 = vshrl.u32 %v272, 7
    %v274 = vsub.s32 %v271, %v273
    %v275 = vrot.slane %v195, %v274
    %v276 = vadd.s32 %v271, 4294967288
    %v277 = vlaneseq
    %v278 = vshrl.u32 %v277, 7
    %v279 = vsub.s32 %v276, %v278
    %v280 = vrot.slane %v196, %v279
    %vm281 = vcmask 130112
    %v282 = vsel %vm281, %v280, %v275
    %v283 = vadd.s32 %v271, 4294967280
    %v284 = vlaneseq
    %v285 = vshrl.u32 %v284, 7
    %v286 = vsub.s32 %v283, %v285
    %v287 = vrot.slane %v197, %v286
    %vm288 = vcmask 195712
    %v289 = vsel %vm288, %v287, %v282
    %v290 = vadd.s32 %v271, 4294967272
    %v291 = vlaneseq
    %v292 = vshrl.u32 %v291, 7
    %v293 = vsub.s32 %v290, %v292
    %v294 = vrot.slane %v198, %v293
    %vm295 = vcmask 261312
    %v296 = vsel %vm295, %v294, %v289
    %v297 = vlaneseq
    %v298 = vshrl.u32 %v297, 7
    %v299 = vsub.s32 %v271, %v298
    %v300 = vrot.slane %v199, %v299
    %v301 = vlaneseq
    %v302 = vshrl.u32 %v301, 7
    %v303 = vsub.s32 %v276, %v302
    %v304 = vrot.slane %v200, %v303
    %v305 = vsel %vm281, %v304, %v300
    %v306 = vlaneseq
    %v307 = vshrl.u32 %v306, 7
    %v308 = vsub.s32 %v283, %v307
    %v309 = vrot.slane %v201, %v308
    %v310 = vsel %vm288, %v309, %v305
    %v311 = vlaneseq
    %v312 = vshrl.u32 %v311, 7
    %v313 = vsub.s32 %v290, %v312
    %v314 = vrot.slane %v202, %v313
    %v315 = vsel %vm295, %v314, %v310
    %v316 = vlaneseq
    %v317 = vshrl.u32 %v316, 7
    %v318 = vsub.s32 %v271, %v317
    %v319 = vrot.slane %v203, %v318
    %v320 = vlaneseq
    %v321 = vshrl.u32 %v320, 7
    %v322 = vsub.s32 %v276, %v321
    %v323 = vrot.slane %v204, %v322
    %v324 = vsel %vm281, %v323, %v319
    %v325 = vlaneseq
    %v326 = vshrl.u32 %v325, 7
    %v327 = vsub.s32 %v283, %v326
    %v328 = vrot.slane %v205, %v327
    %v329 = vsel %vm288, %v328, %v324
    %v330 = vlaneseq
    %v331 = vshrl.u32 %v330, 7
    %v332 = vsub.s32 %v290, %v331
    %v333 = vrot.slane %v206, %v332
    %v334 = vsel %vm295, %v333, %v329
    %v335 = vlaneseq
    %v336 = vshrl.u32 %v335, 7
    %v337 = vsub.s32 %v271, %v336
    %v338 = vrot.slane %v207, %v337
    %v339 = vlaneseq
    %v340 = vshrl.u32 %v339, 7
    %v341 = vsub.s32 %v276, %v340
    %v342 = vrot.slane %v208, %v341
    %v343 = vsel %vm281, %v342, %v338
    %v344 = vlaneseq
    %v345 = vshrl.u32 %v344, 7
    %v346 = vsub.s32 %v283, %v345
    %v347 = vrot.slane %v209, %v346
    %v348 = vsel %vm288, %v347, %v343
    %v349 = vlaneseq
    %v350 = vshrl.u32 %v349, 7
    %v351 = vsub.s32 %v290, %v350
    %v352 = vrot.slane %v210, %v351
    %v353 = vsel %vm295, %v352, %v348
    %v354 = vlaneseq
    %v355 = vshrl.u32 %v354, 7
    %v356 = vsub.s32 %v271, %v355
    %v357 = vrot.slane %v211, %v356
    %v358 = vlaneseq
    %v359 = vshrl.u32 %v358, 7
    %v360 = vsub.s32 %v276, %v359
    %v361 = vrot.slane %v212, %v360
    %v362 = vsel %vm281, %v361, %v357
    %v363 = vlaneseq
    %v364 = vshrl.u32 %v363, 7
    %v365 = vsub.s32 %v283, %v364
    %v366 = vrot.slane %v213, %v365
    %v367 = vsel %vm288, %v366, %v362
    %v368 = vlaneseq
    %v369 = vshrl.u32 %v368, 7
    %v370 = vsub.s32 %v290, %v369
    %v371 = vrot.slane %v214, %v370
    %v372 = vsel %vm295, %v371, %v367
    %v373 = vlaneseq
    %v374 = vshrl.u32 %v373, 7
    %v375 = vsub.s32 %v271, %v374
    %v376 = vrot.slane %v215, %v375
    %v377 = vlaneseq
    %v378 = vshrl.u32 %v377, 7
    %v379 = vsub.s32 %v276, %v378
    %v380 = vrot.slane %v216, %v379
    %v381 = vsel %vm281, %v380, %v376
    %v382 = vlaneseq
    %v383 = vshrl.u32 %v382, 7
    %v384 = vsub.s32 %v283, %v383
    %v385 = vrot.slane %v217, %v384
    %v386 = vsel %vm288, %v385, %v381
    %v387 = vlaneseq
    %v388 = vshrl.u32 %v387, 7
    %v389 = vsub.s32 %v290, %v388
    %v390 = vrot.slane %v218, %v389
    %v391 = vsel %vm295, %v390, %v386
    %v392 = vlaneseq
    %v393 = vshrl.u32 %v392, 7
    %v394 = vsub.s32 %v271, %v393
    %v395 = vrot.slane %v219, %v394
    %v396 = vlaneseq
    %v397 = vshrl.u32 %v396, 7
    %v398 = vsub.s32 %v276, %v397
    %v399 = vrot.slane %v220, %v398
    %v400 = vsel %vm281, %v399, %v395
    %v401 = vlaneseq
    %v402 = vshrl.u32 %v401, 7
    %v403 = vsub.s32 %v283, %v402
    %v404 = vrot.slane %v221, %v403
    %v405 = vsel %vm288, %v404, %v400
    %v406 = vlaneseq
    %v407 = vshrl.u32 %v406, 7
    %v408 = vsub.s32 %v290, %v407
    %v409 = vrot.slane %v222, %v408
    %v410 = vsel %vm295, %v409, %v405
    %v411 = vlaneseq
    %v412 = vshrl.u32 %v411, 7
    %v413 = vsub.s32 %v271, %v412
    %v414 = vrot.slane %v223, %v413
    %v415 = vlaneseq
    %v416 = vshrl.u32 %v415, 7
    %v417 = vsub.s32 %v276, %v416
    %v418 = vrot.slane %v224, %v417
    %v419 = vsel %vm281, %v418, %v414
    %v420 = vlaneseq
    %v421 = vshrl.u32 %v420, 7
    %v422 = vsub.s32 %v283, %v421
    %v423 = vrot.slane %v225, %v422
    %v424 = vsel %vm288, %v423, %v419
    %v425 = vlaneseq
    %v426 = vshrl.u32 %v425, 7
    %v427 = vsub.s32 %v290, %v426
    %v428 = vrot.slane %v226, %v427
    %v429 = vsel %vm295, %v428, %v424
    %vm430 = vcmask 1041409
    %v431 = vsel %vm430, %v315, %v296
    %vm432 = vcmask 1042434
    %v433 = vsel %vm432, %v334, %v431
    %vm434 = vcmask 1043459
    %v435 = vsel %vm434, %v353, %v433
    %vm436 = vcmask 1044484
    %v437 = vsel %vm436, %v372, %v435
    %vm438 = vcmask 1045509
    %v439 = vsel %vm438, %v391, %v437
    %vm440 = vcmask 1046534
    %v441 = vsel %vm440, %v410, %v439
    %vm442 = vcmask 1047559
    %v443 = vsel %vm442, %v429, %v441
    %vm444 = vcmask 261120
    %v445 = vsel %vm444, %v443, 0
    %447 = vmatprep.subr.mxu0 0.0
    %v448 = vand.u32 %v227, 4294901760
    %449 = vmatpush1.msra.mxu0 %v448
    %450 = vmatprep.subr.mxu0 0.0
    %v451 = vand.u32 %v228, 4294901760
    %452 = vmatpush1.msra.mxu0 %v451
    %453 = vmatprep.subr.mxu0 0.0
    %v454 = vand.u32 %v229, 4294901760
    %455 = vmatpush1.msra.mxu0 %v454
    %456 = vmatprep.subr.mxu0 0.0
    %v457 = vand.u32 %v230, 4294901760
    %458 = vmatpush1.msra.mxu0 %v457
    %459 = vmatprep.subr.mxu0 0.0
    %460 = vmatpush1.msra.mxu0 0.0
    %461 = vmatprep.subr.mxu0 0.0
    %462 = vmatpush1.msra.mxu0 0.0
    %463 = vmatprep.subr.mxu0 0.0
    %464 = vmatpush1.msra.mxu0 0.0
    %465 = vmatprep.subr.mxu0 0.0
    %466 = vmatpush1.msra.mxu0 0.0
    %467 = vmatprep.subr.mxu0 0.0
    %468 = vmatpush1.msra.mxu0 0.0
    %469 = vmatprep.subr.mxu0 0.0
    %470 = vmatpush1.msra.mxu0 0.0
    %471 = vmatprep.subr.mxu0 0.0
    %472 = vmatpush1.msra.mxu0 0.0
    %473 = vmatprep.subr.mxu0 0.0
    %474 = vmatpush1.msra.mxu0 0.0
    %475 = vmatprep.subr.mxu0 0.0
    %476 = vmatpush1.msra.mxu0 0.0
    %477 = vmatprep.subr.mxu0 0.0
    %478 = vmatpush1.msra.mxu0 0.0
    %479 = vmatprep.subr.mxu0 0.0
    %480 = vmatpush1.msra.mxu0 0.0
    %481 = vmatprep.subr.mxu0 0.0
    %482 = vmatpush1.msra.mxu0 0.0
    %483 = vmatprep.subr.mxu0 0.0
    %484 = vmatpush1.msra.mxu0 0.0
    %485 = vmatprep.subr.mxu0 0.0
    %486 = vmatpush1.msra.mxu0 0.0
    %487 = vmatprep.subr.mxu0 0.0
    %488 = vmatpush1.msra.mxu0 0.0
    %489 = vmatprep.subr.mxu0 0.0
    %490 = vmatpush1.msra.mxu0 0.0
    %491 = vmatprep.subr.mxu0 0.0
    %492 = vmatpush1.msra.mxu0 0.0
    %493 = vmatprep.subr.mxu0 0.0
    %494 = vmatpush1.msra.mxu0 0.0
    %495 = vmatprep.subr.mxu0 0.0
    %496 = vmatpush1.msra.mxu0 0.0
    %497 = vmatprep.subr.mxu0 0.0
    %498 = vmatpush1.msra.mxu0 0.0
    %499 = vmatprep.subr.mxu0 0.0
    %500 = vmatpush1.msra.mxu0 0.0
    %501 = vmatprep.subr.mxu0 0.0
    %502 = vmatpush1.msra.mxu0 0.0
    %503 = vmatprep.subr.mxu0 0.0
    %504 = vmatpush1.msra.mxu0 0.0
    %505 = vmatprep.subr.mxu0 0.0
    %506 = vmatpush1.msra.mxu0 0.0
    %507 = vmatprep.subr.mxu0 0.0
    %508 = vmatpush1.msra.mxu0 0.0
    %509 = vmatprep.subr.mxu0 0.0
    %510 = vmatpush1.msra.mxu0 0.0
    %511 = vmatprep.subr.mxu0 0.0
    %512 = vmatpush1.msra.mxu0 0.0
    %513 = vmatprep.subr.mxu0 0.0
    %514 = vmatpush1.msra.mxu0 0.0
    %515 = vmatprep.mubr.f32.mxu0 0.0
    %v516 = vand.u32 %v445, 4294901760
    %v517 = vsub.f32 %v445, %v516
    %v518 = vand.u32 %v517, 4294901760
    %v519 = vsub.f32 %v517, %v518
    %v520 = vand.u32 %v519, 4294901760
    %521 = vmatmul.mubr.f32.gmra.mrb[0].mxu0 %v520
    %v522 = vpop.f32.mrb[0].mxu0
    %v523 = vadd.f32 %v236, %v522
    %v524 = vpop.f32.mrb[0].mxu0
    %525 = vdwg.mxu0
    %526 = vmatprep.subr.mxu0 0.0
    %v527 = vand.u32 %v227, 4294901760
    %v528 = vsub.f32 %v227, %v527
    %v529 = vand.u32 %v528, 4294901760
    %v530 = vsub.f32 %v528, %v529
    %v531 = vand.u32 %v530, 4294901760
    %532 = vmatpush1.msra.mxu0 %v531
    %533 = vmatprep.subr.mxu0 0.0
    %v534 = vand.u32 %v228, 4294901760
    %v535 = vsub.f32 %v228, %v534
    %v536 = vand.u32 %v535, 4294901760
    %v537 = vsub.f32 %v535, %v536
    %v538 = vand.u32 %v537, 4294901760
    %539 = vmatpush1.msra.mxu0 %v538
    %540 = vmatprep.subr.mxu0 0.0
    %v541 = vand.u32 %v229, 4294901760
    %v542 = vsub.f32 %v229, %v541
    %v543 = vand.u32 %v542, 4294901760
    %v544 = vsub.f32 %v542, %v543
    %v545 = vand.u32 %v544, 4294901760
    %546 = vmatpush1.msra.mxu0 %v545
    %547 = vmatprep.subr.mxu0 0.0
    %v548 = vand.u32 %v230, 4294901760
    %v549 = vsub.f32 %v230, %v548
    %v550 = vand.u32 %v549, 4294901760
    %v551 = vsub.f32 %v549, %v550
    %v552 = vand.u32 %v551, 4294901760
    %553 = vmatpush1.msra.mxu0 %v552
    %554 = vmatprep.subr.mxu0 0.0
    %555 = vmatpush1.msra.mxu0 0.0
    %556 = vmatprep.subr.mxu0 0.0
    %557 = vmatpush1.msra.mxu0 0.0
    %558 = vmatprep.subr.mxu0 0.0
    %559 = vmatpush1.msra.mxu0 0.0
    %560 = vmatprep.subr.mxu0 0.0
    %561 = vmatpush1.msra.mxu0 0.0
    %562 = vmatprep.subr.mxu0 0.0
    %563 = vmatpush1.msra.mxu0 0.0
    %564 = vmatprep.subr.mxu0 0.0
    %565 = vmatpush1.msra.mxu0 0.0
    %566 = vmatprep.subr.mxu0 0.0
    %567 = vmatpush1.msra.mxu0 0.0
    %568 = vmatprep.subr.mxu0 0.0
    %569 = vmatpush1.msra.mxu0 0.0
    %570 = vmatprep.subr.mxu0 0.0
    %571 = vmatpush1.msra.mxu0 0.0
    %572 = vmatprep.subr.mxu0 0.0
    %573 = vmatpush1.msra.mxu0 0.0
    %574 = vmatprep.subr.mxu0 0.0
    %575 = vmatpush1.msra.mxu0 0.0
    %576 = vmatprep.subr.mxu0 0.0
    %577 = vmatpush1.msra.mxu0 0.0
    %578 = vmatprep.subr.mxu0 0.0
    %579 = vmatpush1.msra.mxu0 0.0
    %580 = vmatprep.subr.mxu0 0.0
    %581 = vmatpush1.msra.mxu0 0.0
    %582 = vmatprep.subr.mxu0 0.0
    %583 = vmatpush1.msra.mxu0 0.0
    %584 = vmatprep.subr.mxu0 0.0
    %585 = vmatpush1.msra.mxu0 0.0
    %586 = vmatprep.subr.mxu0 0.0
    %587 = vmatpush1.msra.mxu0 0.0
    %588 = vmatprep.subr.mxu0 0.0
    %589 = vmatpush1.msra.mxu0 0.0
    %590 = vmatprep.subr.mxu0 0.0
    %591 = vmatpush1.msra.mxu0 0.0
    %592 = vmatprep.subr.mxu0 0.0
    %593 = vmatpush1.msra.mxu0 0.0
    %594 = vmatprep.subr.mxu0 0.0
    %595 = vmatpush1.msra.mxu0 0.0
    %596 = vmatprep.subr.mxu0 0.0
    %597 = vmatpush1.msra.mxu0 0.0
    %598 = vmatprep.subr.mxu0 0.0
    %599 = vmatpush1.msra.mxu0 0.0
    %600 = vmatprep.subr.mxu0 0.0
    %601 = vmatpush1.msra.mxu0 0.0
    %602 = vmatprep.subr.mxu0 0.0
    %603 = vmatpush1.msra.mxu0 0.0
    %604 = vmatprep.subr.mxu0 0.0
    %605 = vmatpush1.msra.mxu0 0.0
    %606 = vmatprep.subr.mxu0 0.0
    %607 = vmatpush1.msra.mxu0 0.0
    %608 = vmatprep.subr.mxu0 0.0
    %609 = vmatpush1.msra.mxu0 0.0
    %610 = vmatprep.mubr.f32.mxu0 0.0
    %v611 = vand.u32 %v445, 4294901760
    %612 = vmatmul.mubr.f32.gmra.mrb[0].mxu0 %v611
    %v613 = vpop.f32.mrb[0].mxu0
    %v614 = vadd.f32 %v523, %v613
    %v615 = vpop.f32.mrb[0].mxu0
    %616 = vdwg.mxu0
    %617 = vmatprep.subr.mxu0 0.0
    %v618 = vand.u32 %v227, 4294901760
    %v619 = vsub.f32 %v227, %v618
    %620 = vmatpush1.msra.mxu0 %v619
    %621 = vmatprep.subr.mxu0 0.0
    %v622 = vand.u32 %v228, 4294901760
    %v623 = vsub.f32 %v228, %v622
    %624 = vmatpush1.msra.mxu0 %v623
    %625 = vmatprep.subr.mxu0 0.0
    %v626 = vand.u32 %v229, 4294901760
    %v627 = vsub.f32 %v229, %v626
    %628 = vmatpush1.msra.mxu0 %v627
    %629 = vmatprep.subr.mxu0 0.0
    %v630 = vand.u32 %v230, 4294901760
    %v631 = vsub.f32 %v230, %v630
    %632 = vmatpush1.msra.mxu0 %v631
    %633 = vmatprep.subr.mxu0 0.0
    %634 = vmatpush1.msra.mxu0 0.0
    %635 = vmatprep.subr.mxu0 0.0
    %636 = vmatpush1.msra.mxu0 0.0
    %637 = vmatprep.subr.mxu0 0.0
    %638 = vmatpush1.msra.mxu0 0.0
    %639 = vmatprep.subr.mxu0 0.0
    %640 = vmatpush1.msra.mxu0 0.0
    %641 = vmatprep.subr.mxu0 0.0
    %642 = vmatpush1.msra.mxu0 0.0
    %643 = vmatprep.subr.mxu0 0.0
    %644 = vmatpush1.msra.mxu0 0.0
    %645 = vmatprep.subr.mxu0 0.0
    %646 = vmatpush1.msra.mxu0 0.0
    %647 = vmatprep.subr.mxu0 0.0
    %648 = vmatpush1.msra.mxu0 0.0
    %649 = vmatprep.subr.mxu0 0.0
    %650 = vmatpush1.msra.mxu0 0.0
    %651 = vmatprep.subr.mxu0 0.0
    %652 = vmatpush1.msra.mxu0 0.0
    %653 = vmatprep.subr.mxu0 0.0
    %654 = vmatpush1.msra.mxu0 0.0
    %655 = vmatprep.subr.mxu0 0.0
    %656 = vmatpush1.msra.mxu0 0.0
    %657 = vmatprep.subr.mxu0 0.0
    %658 = vmatpush1.msra.mxu0 0.0
    %659 = vmatprep.subr.mxu0 0.0
    %660 = vmatpush1.msra.mxu0 0.0
    %661 = vmatprep.subr.mxu0 0.0
    %662 = vmatpush1.msra.mxu0 0.0
    %663 = vmatprep.subr.mxu0 0.0
    %664 = vmatpush1.msra.mxu0 0.0
    %665 = vmatprep.subr.mxu0 0.0
    %666 = vmatpush1.msra.mxu0 0.0
    %667 = vmatprep.subr.mxu0 0.0
    %668 = vmatpush1.msra.mxu0 0.0
    %669 = vmatprep.subr.mxu0 0.0
    %670 = vmatpush1.msra.mxu0 0.0
    %671 = vmatprep.subr.mxu0 0.0
    %672 = vmatpush1.msra.mxu0 0.0
    %673 = vmatprep.subr.mxu0 0.0
    %674 = vmatpush1.msra.mxu0 0.0
    %675 = vmatprep.subr.mxu0 0.0
    %676 = vmatpush1.msra.mxu0 0.0
    %677 = vmatprep.subr.mxu0 0.0
    %678 = vmatpush1.msra.mxu0 0.0
    %679 = vmatprep.subr.mxu0 0.0
    %680 = vmatpush1.msra.mxu0 0.0
    %681 = vmatprep.subr.mxu0 0.0
    %682 = vmatpush1.msra.mxu0 0.0
    %683 = vmatprep.subr.mxu0 0.0
    %684 = vmatpush1.msra.mxu0 0.0
    %685 = vmatprep.subr.mxu0 0.0
    %686 = vmatpush1.msra.mxu0 0.0
    %687 = vmatprep.subr.mxu0 0.0
    %688 = vmatpush1.msra.mxu0 0.0
    %689 = vmatprep.mubr.f32.mxu0 0.0
    %v690 = vand.u32 %v445, 4294901760
    %v691 = vsub.f32 %v445, %v690
    %692 = vmatmul.mubr.f32.gmra.mrb[0].mxu0 %v691
    %v693 = vpop.f32.mrb[0].mxu0
    %v694 = vadd.f32 %v614, %v693
    %v695 = vpop.f32.mrb[0].mxu0
    %696 = vdwg.mxu0
    %697 = vmatprep.subr.mxu0 0.0
    %v698 = vand.u32 %v227, 4294901760
    %699 = vmatpush1.msra.mxu0 %v698
    %700 = vmatprep.subr.mxu0 0.0
    %v701 = vand.u32 %v228, 4294901760
    %702 = vmatpush1.msra.mxu0 %v701
    %703 = vmatprep.subr.mxu0 0.0
    %v704 = vand.u32 %v229, 4294901760
    %705 = vmatpush1.msra.mxu0 %v704
    %706 = vmatprep.subr.mxu0 0.0
    %v707 = vand.u32 %v230, 4294901760
    %708 = vmatpush1.msra.mxu0 %v707
    %709 = vmatprep.subr.mxu0 0.0
    %710 = vmatpush1.msra.mxu0 0.0
    %711 = vmatprep.subr.mxu0 0.0
    %712 = vmatpush1.msra.mxu0 0.0
    %713 = vmatprep.subr.mxu0 0.0
    %714 = vmatpush1.msra.mxu0 0.0
    %715 = vmatprep.subr.mxu0 0.0
    %716 = vmatpush1.msra.mxu0 0.0
    %717 = vmatprep.subr.mxu0 0.0
    %718 = vmatpush1.msra.mxu0 0.0
    %719 = vmatprep.subr.mxu0 0.0
    %720 = vmatpush1.msra.mxu0 0.0
    %721 = vmatprep.subr.mxu0 0.0
    %722 = vmatpush1.msra.mxu0 0.0
    %723 = vmatprep.subr.mxu0 0.0
    %724 = vmatpush1.msra.mxu0 0.0
    %725 = vmatprep.subr.mxu0 0.0
    %726 = vmatpush1.msra.mxu0 0.0
    %727 = vmatprep.subr.mxu0 0.0
    %728 = vmatpush1.msra.mxu0 0.0
    %729 = vmatprep.subr.mxu0 0.0
    %730 = vmatpush1.msra.mxu0 0.0
    %731 = vmatprep.subr.mxu0 0.0
    %732 = vmatpush1.msra.mxu0 0.0
    %733 = vmatprep.subr.mxu0 0.0
    %734 = vmatpush1.msra.mxu0 0.0
    %735 = vmatprep.subr.mxu0 0.0
    %736 = vmatpush1.msra.mxu0 0.0
    %737 = vmatprep.subr.mxu0 0.0
    %738 = vmatpush1.msra.mxu0 0.0
    %739 = vmatprep.subr.mxu0 0.0
    %740 = vmatpush1.msra.mxu0 0.0
    %741 = vmatprep.subr.mxu0 0.0
    %742 = vmatpush1.msra.mxu0 0.0
    %743 = vmatprep.subr.mxu0 0.0
    %744 = vmatpush1.msra.mxu0 0.0
    %745 = vmatprep.subr.mxu0 0.0
    %746 = vmatpush1.msra.mxu0 0.0
    %747 = vmatprep.subr.mxu0 0.0
    %748 = vmatpush1.msra.mxu0 0.0
    %749 = vmatprep.subr.mxu0 0.0
    %750 = vmatpush1.msra.mxu0 0.0
    %751 = vmatprep.subr.mxu0 0.0
    %752 = vmatpush1.msra.mxu0 0.0
    %753 = vmatprep.subr.mxu0 0.0
    %754 = vmatpush1.msra.mxu0 0.0
    %755 = vmatprep.subr.mxu0 0.0
    %756 = vmatpush1.msra.mxu0 0.0
    %757 = vmatprep.subr.mxu0 0.0
    %758 = vmatpush1.msra.mxu0 0.0
    %759 = vmatprep.subr.mxu0 0.0
    %760 = vmatpush1.msra.mxu0 0.0
    %761 = vmatprep.subr.mxu0 0.0
    %762 = vmatpush1.msra.mxu0 0.0
    %763 = vmatprep.subr.mxu0 0.0
    %764 = vmatpush1.msra.mxu0 0.0
    %765 = vmatprep.mubr.f32.mxu0 0.0
    %v766 = vand.u32 %v445, 4294901760
    %v767 = vsub.f32 %v445, %v766
    %v768 = vand.u32 %v767, 4294901760
    %769 = vmatmul.mubr.f32.gmra.mrb[0].mxu0 %v768
    %v770 = vpop.f32.mrb[0].mxu0
    %v771 = vadd.f32 %v694, %v770
    %v772 = vpop.f32.mrb[0].mxu0
    %773 = vdwg.mxu0
    %774 = vmatprep.subr.mxu0 0.0
    %v775 = vand.u32 %v227, 4294901760
    %v776 = vsub.f32 %v227, %v775
    %v777 = vand.u32 %v776, 4294901760
    %778 = vmatpush1.msra.mxu0 %v777
    %779 = vmatprep.subr.mxu0 0.0
    %v780 = vand.u32 %v228, 4294901760
    %v781 = vsub.f32 %v228, %v780
    %v782 = vand.u32 %v781, 4294901760
    %783 = vmatpush1.msra.mxu0 %v782
    %784 = vmatprep.subr.mxu0 0.0
    %v785 = vand.u32 %v229, 4294901760
    %v786 = vsub.f32 %v229, %v785
    %v787 = vand.u32 %v786, 4294901760
    %788 = vmatpush1.msra.mxu0 %v787
    %789 = vmatprep.subr.mxu0 0.0
    %v790 = vand.u32 %v230, 4294901760
    %v791 = vsub.f32 %v230, %v790
    %v792 = vand.u32 %v791, 4294901760
    %793 = vmatpush1.msra.mxu0 %v792
    %794 = vmatprep.subr.mxu0 0.0
    %795 = vmatpush1.msra.mxu0 0.0
    %796 = vmatprep.subr.mxu0 0.0
    %797 = vmatpush1.msra.mxu0 0.0
    %798 = vmatprep.subr.mxu0 0.0
    %799 = vmatpush1.msra.mxu0 0.0
    %800 = vmatprep.subr.mxu0 0.0
    %801 = vmatpush1.msra.mxu0 0.0
    %802 = vmatprep.subr.mxu0 0.0
    %803 = vmatpush1.msra.mxu0 0.0
    %804 = vmatprep.subr.mxu0 0.0
    %805 = vmatpush1.msra.mxu0 0.0
    %806 = vmatprep.subr.mxu0 0.0
    %807 = vmatpush1.msra.mxu0 0.0
    %808 = vmatprep.subr.mxu0 0.0
    %809 = vmatpush1.msra.mxu0 0.0
    %810 = vmatprep.subr.mxu0 0.0
    %811 = vmatpush1.msra.mxu0 0.0
    %812 = vmatprep.subr.mxu0 0.0
    %813 = vmatpush1.msra.mxu0 0.0
    %814 = vmatprep.subr.mxu0 0.0
    %815 = vmatpush1.msra.mxu0 0.0
    %816 = vmatprep.subr.mxu0 0.0
    %817 = vmatpush1.msra.mxu0 0.0
    %818 = vmatprep.subr.mxu0 0.0
    %819 = vmatpush1.msra.mxu0 0.0
    %820 = vmatprep.subr.mxu0 0.0
    %821 = vmatpush1.msra.mxu0 0.0
    %822 = vmatprep.subr.mxu0 0.0
    %823 = vmatpush1.msra.mxu0 0.0
    %824 = vmatprep.subr.mxu0 0.0
    %825 = vmatpush1.msra.mxu0 0.0
    %826 = vmatprep.subr.mxu0 0.0
    %827 = vmatpush1.msra.mxu0 0.0
    %828 = vmatprep.subr.mxu0 0.0
    %829 = vmatpush1.msra.mxu0 0.0
    %830 = vmatprep.subr.mxu0 0.0
    %831 = vmatpush1.msra.mxu0 0.0
    %832 = vmatprep.subr.mxu0 0.0
    %833 = vmatpush1.msra.mxu0 0.0
    %834 = vmatprep.subr.mxu0 0.0
    %835 = vmatpush1.msra.mxu0 0.0
    %836 = vmatprep.subr.mxu0 0.0
    %837 = vmatpush1.msra.mxu0 0.0
    %838 = vmatprep.subr.mxu0 0.0
    %839 = vmatpush1.msra.mxu0 0.0
    %840 = vmatprep.subr.mxu0 0.0
    %841 = vmatpush1.msra.mxu0 0.0
    %842 = vmatprep.subr.mxu0 0.0
    %843 = vmatpush1.msra.mxu0 0.0
    %844 = vmatprep.subr.mxu0 0.0
    %845 = vmatpush1.msra.mxu0 0.0
    %846 = vmatprep.subr.mxu0 0.0
    %847 = vmatpush1.msra.mxu0 0.0
    %848 = vmatprep.subr.mxu0 0.0
    %849 = vmatpush1.msra.mxu0 0.0
    %850 = vmatprep.mubr.f32.mxu0 0.0
    %v851 = vand.u32 %v445, 4294901760
    %852 = vmatmul.mubr.f32.gmra.mrb[0].mxu0 %v851
    %v853 = vpop.f32.mrb[0].mxu0
    %v854 = vadd.f32 %v771, %v853
    %v855 = vpop.f32.mrb[0].mxu0
    %856 = vdwg.mxu0
    %857 = vmatprep.subr.mxu0 0.0
    %v858 = vand.u32 %v227, 4294901760
    %859 = vmatpush1.msra.mxu0 %v858
    %860 = vmatprep.subr.mxu0 0.0
    %v861 = vand.u32 %v228, 4294901760
    %862 = vmatpush1.msra.mxu0 %v861
    %863 = vmatprep.subr.mxu0 0.0
    %v864 = vand.u32 %v229, 4294901760
    %865 = vmatpush1.msra.mxu0 %v864
    %866 = vmatprep.subr.mxu0 0.0
    %v867 = vand.u32 %v230, 4294901760
    %868 = vmatpush1.msra.mxu0 %v867
    %869 = vmatprep.subr.mxu0 0.0
    %870 = vmatpush1.msra.mxu0 0.0
    %871 = vmatprep.subr.mxu0 0.0
    %872 = vmatpush1.msra.mxu0 0.0
    %873 = vmatprep.subr.mxu0 0.0
    %874 = vmatpush1.msra.mxu0 0.0
    %875 = vmatprep.subr.mxu0 0.0
    %876 = vmatpush1.msra.mxu0 0.0
    %877 = vmatprep.subr.mxu0 0.0
    %878 = vmatpush1.msra.mxu0 0.0
    %879 = vmatprep.subr.mxu0 0.0
    %880 = vmatpush1.msra.mxu0 0.0
    %881 = vmatprep.subr.mxu0 0.0
    %882 = vmatpush1.msra.mxu0 0.0
    %883 = vmatprep.subr.mxu0 0.0
    %884 = vmatpush1.msra.mxu0 0.0
    %885 = vmatprep.subr.mxu0 0.0
    %886 = vmatpush1.msra.mxu0 0.0
    %887 = vmatprep.subr.mxu0 0.0
    %888 = vmatpush1.msra.mxu0 0.0
    %889 = vmatprep.subr.mxu0 0.0
    %890 = vmatpush1.msra.mxu0 0.0
    %891 = vmatprep.subr.mxu0 0.0
    %892 = vmatpush1.msra.mxu0 0.0
    %893 = vmatprep.subr.mxu0 0.0
    %894 = vmatpush1.msra.mxu0 0.0
    %895 = vmatprep.subr.mxu0 0.0
    %896 = vmatpush1.msra.mxu0 0.0
    %897 = vmatprep.subr.mxu0 0.0
    %898 = vmatpush1.msra.mxu0 0.0
    %899 = vmatprep.subr.mxu0 0.0
    %900 = vmatpush1.msra.mxu0 0.0
    %901 = vmatprep.subr.mxu0 0.0
    %902 = vmatpush1.msra.mxu0 0.0
    %903 = vmatprep.subr.mxu0 0.0
    %904 = vmatpush1.msra.mxu0 0.0
    %905 = vmatprep.subr.mxu0 0.0
    %906 = vmatpush1.msra.mxu0 0.0
    %907 = vmatprep.subr.mxu0 0.0
    %908 = vmatpush1.msra.mxu0 0.0
    %909 = vmatprep.subr.mxu0 0.0
    %910 = vmatpush1.msra.mxu0 0.0
    %911 = vmatprep.subr.mxu0 0.0
    %912 = vmatpush1.msra.mxu0 0.0
    %913 = vmatprep.subr.mxu0 0.0
    %914 = vmatpush1.msra.mxu0 0.0
    %915 = vmatprep.subr.mxu0 0.0
    %916 = vmatpush1.msra.mxu0 0.0
    %917 = vmatprep.subr.mxu0 0.0
    %918 = vmatpush1.msra.mxu0 0.0
    %919 = vmatprep.subr.mxu0 0.0
    %920 = vmatpush1.msra.mxu0 0.0
    %921 = vmatprep.subr.mxu0 0.0
    %922 = vmatpush1.msra.mxu0 0.0
    %923 = vmatprep.subr.mxu0 0.0
    %924 = vmatpush1.msra.mxu0 0.0
    %925 = vmatprep.mubr.f32.mxu0 0.0
    %v926 = vand.u32 %v445, 4294901760
    %927 = vmatmul.mubr.f32.gmra.mrb[0].mxu0 %v926
    %v928 = vpop.f32.mrb[0].mxu0
    %v929 = vadd.f32 %v854, %v928
    %v930 = vpop.f32.mrb[0].mxu0
    %931 = vdwg.mxu0
    %v932 = vmax.f32 %v929, 0.0
    %v933 = vld [vmem:[%s3] sm:$0x3]
    %v934 = vld [vmem:[%s4] sm:$0x1]
    %v936 = vlaneseq
    %v937 = vshrl.u32 %v936, 7
    %v938 = vsub.s32 0, %v937
    %v939 = vrot.slane %v934, %v938
    %vm941 = vcmask 15360
    %v943 = vsel %vm941, %v932, 0
    %vm945 = vcmask 1041408
    %v947 = vsel %vm945, %v933, 0
    %949 = vmatprep.subr.mxu0 0.0
    %v950 = vand.u32 %v947, 4294901760
    %951 = vmatpush1.msra.mxu0 %v950
    %952 = vmatprep.subr.mxu0 0.0
    %953 = vmatpush1.msra.mxu0 0.0
    %954 = vmatprep.subr.mxu0 0.0
    %955 = vmatpush1.msra.mxu0 0.0
    %956 = vmatprep.subr.mxu0 0.0
    %957 = vmatpush1.msra.mxu0 0.0
    %958 = vmatprep.subr.mxu0 0.0
    %959 = vmatpush1.msra.mxu0 0.0
    %960 = vmatprep.subr.mxu0 0.0
    %961 = vmatpush1.msra.mxu0 0.0
    %962 = vmatprep.subr.mxu0 0.0
    %963 = vmatpush1.msra.mxu0 0.0
    %964 = vmatprep.subr.mxu0 0.0
    %965 = vmatpush1.msra.mxu0 0.0
    %966 = vmatprep.subr.mxu0 0.0
    %967 = vmatpush1.msra.mxu0 0.0
    %968 = vmatprep.subr.mxu0 0.0
    %969 = vmatpush1.msra.mxu0 0.0
    %970 = vmatprep.subr.mxu0 0.0
    %971 = vmatpush1.msra.mxu0 0.0
    %972 = vmatprep.subr.mxu0 0.0
    %973 = vmatpush1.msra.mxu0 0.0
    %974 = vmatprep.subr.mxu0 0.0
    %975 = vmatpush1.msra.mxu0 0.0
    %976 = vmatprep.subr.mxu0 0.0
    %977 = vmatpush1.msra.mxu0 0.0
    %978 = vmatprep.subr.mxu0 0.0
    %979 = vmatpush1.msra.mxu0 0.0
    %980 = vmatprep.subr.mxu0 0.0
    %981 = vmatpush1.msra.mxu0 0.0
    %982 = vmatprep.subr.mxu0 0.0
    %983 = vmatpush1.msra.mxu0 0.0
    %984 = vmatprep.subr.mxu0 0.0
    %985 = vmatpush1.msra.mxu0 0.0
    %986 = vmatprep.subr.mxu0 0.0
    %987 = vmatpush1.msra.mxu0 0.0
    %988 = vmatprep.subr.mxu0 0.0
    %989 = vmatpush1.msra.mxu0 0.0
    %990 = vmatprep.subr.mxu0 0.0
    %991 = vmatpush1.msra.mxu0 0.0
    %992 = vmatprep.subr.mxu0 0.0
    %993 = vmatpush1.msra.mxu0 0.0
    %994 = vmatprep.subr.mxu0 0.0
    %995 = vmatpush1.msra.mxu0 0.0
    %996 = vmatprep.subr.mxu0 0.0
    %997 = vmatpush1.msra.mxu0 0.0
    %998 = vmatprep.subr.mxu0 0.0
    %999 = vmatpush1.msra.mxu0 0.0
    %1000 = vmatprep.subr.mxu0 0.0
    %1001 = vmatpush1.msra.mxu0 0.0
    %1002 = vmatprep.subr.mxu0 0.0
    %1003 = vmatpush1.msra.mxu0 0.0
    %1004 = vmatprep.subr.mxu0 0.0
    %1005 = vmatpush1.msra.mxu0 0.0
    %1006 = vmatprep.subr.mxu0 0.0
    %1007 = vmatpush1.msra.mxu0 0.0
    %1008 = vmatprep.subr.mxu0 0.0
    %1009 = vmatpush1.msra.mxu0 0.0
    %1010 = vmatprep.subr.mxu0 0.0
    %1011 = vmatpush1.msra.mxu0 0.0
    %1012 = vmatprep.subr.mxu0 0.0
    %1013 = vmatpush1.msra.mxu0 0.0
    %1014 = vmatprep.mubr.f32.mxu0 0.0
    %v1015 = vand.u32 %v943, 4294901760
    %v1016 = vsub.f32 %v943, %v1015
    %v1017 = vand.u32 %v1016, 4294901760
    %v1018 = vsub.f32 %v1016, %v1017
    %v1019 = vand.u32 %v1018, 4294901760
    %1020 = vmatmul.mubr.f32.gmra.mrb[0].mxu0 %v1019
    %v1021 = vpop.f32.mrb[0].mxu0
    %v1022 = vadd.f32 %v939, %v1021
    %v1023 = vpop.f32.mrb[0].mxu0
    %1024 = vdwg.mxu0
    %1025 = vmatprep.subr.mxu0 0.0
    %v1026 = vand.u32 %v947, 4294901760
    %v1027 = vsub.f32 %v947, %v1026
    %v1028 = vand.u32 %v1027, 4294901760
    %v1029 = vsub.f32 %v1027, %v1028
    %v1030 = vand.u32 %v1029, 4294901760
    %1031 = vmatpush1.msra.mxu0 %v1030
    %1032 = vmatprep.subr.mxu0 0.0
    %1033 = vmatpush1.msra.mxu0 0.0
    %1034 = vmatprep.subr.mxu0 0.0
    %1035 = vmatpush1.msra.mxu0 0.0
    %1036 = vmatprep.subr.mxu0 0.0
    %1037 = vmatpush1.msra.mxu0 0.0
    %1038 = vmatprep.subr.mxu0 0.0
    %1039 = vmatpush1.msra.mxu0 0.0
    %1040 = vmatprep.subr.mxu0 0.0
    %1041 = vmatpush1.msra.mxu0 0.0
    %1042 = vmatprep.subr.mxu0 0.0
    %1043 = vmatpush1.msra.mxu0 0.0
    %1044 = vmatprep.subr.mxu0 0.0
    %1045 = vmatpush1.msra.mxu0 0.0
    %1046 = vmatprep.subr.mxu0 0.0
    %1047 = vmatpush1.msra.mxu0 0.0
    %1048 = vmatprep.subr.mxu0 0.0
    %1049 = vmatpush1.msra.mxu0 0.0
    %1050 = vmatprep.subr.mxu0 0.0
    %1051 = vmatpush1.msra.mxu0 0.0
    %1052 = vmatprep.subr.mxu0 0.0
    %1053 = vmatpush1.msra.mxu0 0.0
    %1054 = vmatprep.subr.mxu0 0.0
    %1055 = vmatpush1.msra.mxu0 0.0
    %1056 = vmatprep.subr.mxu0 0.0
    %1057 = vmatpush1.msra.mxu0 0.0
    %1058 = vmatprep.subr.mxu0 0.0
    %1059 = vmatpush1.msra.mxu0 0.0
    %1060 = vmatprep.subr.mxu0 0.0
    %1061 = vmatpush1.msra.mxu0 0.0
    %1062 = vmatprep.subr.mxu0 0.0
    %1063 = vmatpush1.msra.mxu0 0.0
    %1064 = vmatprep.subr.mxu0 0.0
    %1065 = vmatpush1.msra.mxu0 0.0
    %1066 = vmatprep.subr.mxu0 0.0
    %1067 = vmatpush1.msra.mxu0 0.0
    %1068 = vmatprep.subr.mxu0 0.0
    %1069 = vmatpush1.msra.mxu0 0.0
    %1070 = vmatprep.subr.mxu0 0.0
    %1071 = vmatpush1.msra.mxu0 0.0
    %1072 = vmatprep.subr.mxu0 0.0
    %1073 = vmatpush1.msra.mxu0 0.0
    %1074 = vmatprep.subr.mxu0 0.0
    %1075 = vmatpush1.msra.mxu0 0.0
    %1076 = vmatprep.subr.mxu0 0.0
    %1077 = vmatpush1.msra.mxu0 0.0
    %1078 = vmatprep.subr.mxu0 0.0
    %1079 = vmatpush1.msra.mxu0 0.0
    %1080 = vmatprep.subr.mxu0 0.0
    %1081 = vmatpush1.msra.mxu0 0.0
    %1082 = vmatprep.subr.mxu0 0.0
    %1083 = vmatpush1.msra.mxu0 0.0
    %1084 = vmatprep.subr.mxu0 0.0
    %1085 = vmatpush1.msra.mxu0 0.0
    %1086 = vmatprep.subr.mxu0 0.0
    %1087 = vmatpush1.msra.mxu0 0.0
    %1088 = vmatprep.subr.mxu0 0.0
    %1089 = vmatpush1.msra.mxu0 0.0
    %1090 = vmatprep.subr.mxu0 0.0
    %1091 = vmatpush1.msra.mxu0 0.0
    %1092 = vmatprep.subr.mxu0 0.0
    %1093 = vmatpush1.msra.mxu0 0.0
    %1094 = vmatprep.mubr.f32.mxu0 0.0
    %v1095 = vand.u32 %v943, 4294901760
    %1096 = vmatmul.mubr.f32.gmra.mrb[0].mxu0 %v1095
    %v1097 = vpop.f32.mrb[0].mxu0
    %v1098 = vadd.f32 %v1022, %v1097
    %v1099 = vpop.f32.mrb[0].mxu0
    %1100 = vdwg.mxu0
    %1101 = vmatprep.subr.mxu0 0.0
    %v1102 = vand.u32 %v947, 4294901760
    %v1103 = vsub.f32 %v947, %v1102
    %1104 = vmatpush1.msra.mxu0 %v1103
    %1105 = vmatprep.subr.mxu0 0.0
    %1106 = vmatpush1.msra.mxu0 0.0
    %1107 = vmatprep.subr.mxu0 0.0
    %1108 = vmatpush1.msra.mxu0 0.0
    %1109 = vmatprep.subr.mxu0 0.0
    %1110 = vmatpush1.msra.mxu0 0.0
    %1111 = vmatprep.subr.mxu0 0.0
    %1112 = vmatpush1.msra.mxu0 0.0
    %1113 = vmatprep.subr.mxu0 0.0
    %1114 = vmatpush1.msra.mxu0 0.0
    %1115 = vmatprep.subr.mxu0 0.0
    %1116 = vmatpush1.msra.mxu0 0.0
    %1117 = vmatprep.subr.mxu0 0.0
    %1118 = vmatpush1.msra.mxu0 0.0
    %1119 = vmatprep.subr.mxu0 0.0
    %1120 = vmatpush1.msra.mxu0 0.0
    %1121 = vmatprep.subr.mxu0 0.0
    %1122 = vmatpush1.msra.mxu0 0.0
    %1123 = vmatprep.subr.mxu0 0.0
    %1124 = vmatpush1.msra.mxu0 0.0
    %1125 = vmatprep.subr.mxu0 0.0
    %1126 = vmatpush1.msra.mxu0 0.0
    %1127 = vmatprep.subr.mxu0 0.0
    %1128 = vmatpush1.msra.mxu0 0.0
    %1129 = vmatprep.subr.mxu0 0.0
    %1130 = vmatpush1.msra.mxu0 0.0
    %1131 = vmatprep.subr.mxu0 0.0
    %1132 = vmatpush1.msra.mxu0 0.0
    %1133 = vmatprep.subr.mxu0 0.0
    %1134 = vmatpush1.msra.mxu0 0.0
    %1135 = vmatprep.subr.mxu0 0.0
    %1136 = vmatpush1.msra.mxu0 0.0
    %1137 = vmatprep.subr.mxu0 0.0
    %1138 = vmatpush1.msra.mxu0 0.0
    %1139 = vmatprep.subr.mxu0 0.0
    %1140 = vmatpush1.msra.mxu0 0.0
    %1141 = vmatprep.subr.mxu0 0.0
    %1142 = vmatpush1.msra.mxu0 0.0
    %1143 = vmatprep.subr.mxu0 0.0
    %1144 = vmatpush1.msra.mxu0 0.0
    %1145 = vmatprep.subr.mxu0 0.0
    %1146 = vmatpush1.msra.mxu0 0.0
    %1147 = vmatprep.subr.mxu0 0.0
    %1148 = vmatpush1.msra.mxu0 0.0
    %1149 = vmatprep.subr.mxu0 0.0
    %1150 = vmatpush1.msra.mxu0 0.0
    %1151 = vmatprep.subr.mxu0 0.0
    %1152 = vmatpush1.msra.mxu0 0.0
    %1153 = vmatprep.subr.mxu0 0.0
    %1154 = vmatpush1.msra.mxu0 0.0
    %1155 = vmatprep.subr.mxu0 0.0
    %1156 = vmatpush1.msra.mxu0 0.0
    %1157 = vmatprep.subr.mxu0 0.0
    %1158 = vmatpush1.msra.mxu0 0.0
    %1159 = vmatprep.subr.mxu0 0.0
    %1160 = vmatpush1.msra.mxu0 0.0
    %1161 = vmatprep.subr.mxu0 0.0
    %1162 = vmatpush1.msra.mxu0 0.0
    %1163 = vmatprep.subr.mxu0 0.0
    %1164 = vmatpush1.msra.mxu0 0.0
    %1165 = vmatprep.subr.mxu0 0.0
    %1166 = vmatpush1.msra.mxu0 0.0
    %1167 = vmatprep.mubr.f32.mxu0 0.0
    %v1168 = vand.u32 %v943, 4294901760
    %v1169 = vsub.f32 %v943, %v1168
    %1170 = vmatmul.mubr.f32.gmra.mrb[0].mxu0 %v1169
    %v1171 = vpop.f32.mrb[0].mxu0
    %v1172 = vadd.f32 %v1098, %v1171
    %v1173 = vpop.f32.mrb[0].mxu0
    %1174 = vdwg.mxu0
    %1175 = vmatprep.subr.mxu0 0.0
    %v1176 = vand.u32 %v947, 4294901760
    %1177 = vmatpush1.msra.mxu0 %v1176
    %1178 = vmatprep.subr.mxu0 0.0
    %1179 = vmatpush1.msra.mxu0 0.0
    %1180 = vmatprep.subr.mxu0 0.0
    %1181 = vmatpush1.msra.mxu0 0.0
    %1182 = vmatprep.subr.mxu0 0.0
    %1183 = vmatpush1.msra.mxu0 0.0
    %1184 = vmatprep.subr.mxu0 0.0
    %1185 = vmatpush1.msra.mxu0 0.0
    %1186 = vmatprep.subr.mxu0 0.0
    %1187 = vmatpush1.msra.mxu0 0.0
    %1188 = vmatprep.subr.mxu0 0.0
    %1189 = vmatpush1.msra.mxu0 0.0
    %1190 = vmatprep.subr.mxu0 0.0
    %1191 = vmatpush1.msra.mxu0 0.0
    %1192 = vmatprep.subr.mxu0 0.0
    %1193 = vmatpush1.msra.mxu0 0.0
    %1194 = vmatprep.subr.mxu0 0.0
    %1195 = vmatpush1.msra.mxu0 0.0
    %1196 = vmatprep.subr.mxu0 0.0
    %1197 = vmatpush1.msra.mxu0 0.0
    %1198 = vmatprep.subr.mxu0 0.0
    %1199 = vmatpush1.msra.mxu0 0.0
    %1200 = vmatprep.subr.mxu0 0.0
    %1201 = vmatpush1.msra.mxu0 0.0
    %1202 = vmatprep.subr.mxu0 0.0
    %1203 = vmatpush1.msra.mxu0 0.0
    %1204 = vmatprep.subr.mxu0 0.0
    %1205 = vmatpush1.msra.mxu0 0.0
    %1206 = vmatprep.subr.mxu0 0.0
    %1207 = vmatpush1.msra.mxu0 0.0
    %1208 = vmatprep.subr.mxu0 0.0
    %1209 = vmatpush1.msra.mxu0 0.0
    %1210 = vmatprep.subr.mxu0 0.0
    %1211 = vmatpush1.msra.mxu0 0.0
    %1212 = vmatprep.subr.mxu0 0.0
    %1213 = vmatpush1.msra.mxu0 0.0
    %1214 = vmatprep.subr.mxu0 0.0
    %1215 = vmatpush1.msra.mxu0 0.0
    %1216 = vmatprep.subr.mxu0 0.0
    %1217 = vmatpush1.msra.mxu0 0.0
    %1218 = vmatprep.subr.mxu0 0.0
    %1219 = vmatpush1.msra.mxu0 0.0
    %1220 = vmatprep.subr.mxu0 0.0
    %1221 = vmatpush1.msra.mxu0 0.0
    %1222 = vmatprep.subr.mxu0 0.0
    %1223 = vmatpush1.msra.mxu0 0.0
    %1224 = vmatprep.subr.mxu0 0.0
    %1225 = vmatpush1.msra.mxu0 0.0
    %1226 = vmatprep.subr.mxu0 0.0
    %1227 = vmatpush1.msra.mxu0 0.0
    %1228 = vmatprep.subr.mxu0 0.0
    %1229 = vmatpush1.msra.mxu0 0.0
    %1230 = vmatprep.subr.mxu0 0.0
    %1231 = vmatpush1.msra.mxu0 0.0
    %1232 = vmatprep.subr.mxu0 0.0
    %1233 = vmatpush1.msra.mxu0 0.0
    %1234 = vmatprep.subr.mxu0 0.0
    %1235 = vmatpush1.msra.mxu0 0.0
    %1236 = vmatprep.subr.mxu0 0.0
    %1237 = vmatpush1.msra.mxu0 0.0
    %1238 = vmatprep.subr.mxu0 0.0
    %1239 = vmatpush1.msra.mxu0 0.0
    %1240 = vmatprep.mubr.f32.mxu0 0.0
    %v1241 = vand.u32 %v943, 4294901760
    %v1242 = vsub.f32 %v943, %v1241
    %v1243 = vand.u32 %v1242, 4294901760
    %1244 = vmatmul.mubr.f32.gmra.mrb[0].mxu0 %v1243
    %v1245 = vpop.f32.mrb[0].mxu0
    %v1246 = vadd.f32 %v1172, %v1245
    %v1247 = vpop.f32.mrb[0].mxu0
    %1248 = vdwg.mxu0
    %1249 = vmatprep.subr.mxu0 0.0
    %v1250 = vand.u32 %v947, 4294901760
    %v1251 = vsub.f32 %v947, %v1250
    %v1252 = vand.u32 %v1251, 4294901760
    %1253 = vmatpush1.msra.mxu0 %v1252
    %1254 = vmatprep.subr.mxu0 0.0
    %1255 = vmatpush1.msra.mxu0 0.0
    %1256 = vmatprep.subr.mxu0 0.0
    %1257 = vmatpush1.msra.mxu0 0.0
    %1258 = vmatprep.subr.mxu0 0.0
    %1259 = vmatpush1.msra.mxu0 0.0
    %1260 = vmatprep.subr.mxu0 0.0
    %1261 = vmatpush1.msra.mxu0 0.0
    %1262 = vmatprep.subr.mxu0 0.0
    %1263 = vmatpush1.msra.mxu0 0.0
    %1264 = vmatprep.subr.mxu0 0.0
    %1265 = vmatpush1.msra.mxu0 0.0
    %1266 = vmatprep.subr.mxu0 0.0
    %1267 = vmatpush1.msra.mxu0 0.0
    %1268 = vmatprep.subr.mxu0 0.0
    %1269 = vmatpush1.msra.mxu0 0.0
    %1270 = vmatprep.subr.mxu0 0.0
    %1271 = vmatpush1.msra.mxu0 0.0
    %1272 = vmatprep.subr.mxu0 0.0
    %1273 = vmatpush1.msra.mxu0 0.0
    %1274 = vmatprep.subr.mxu0 0.0
    %1275 = vmatpush1.msra.mxu0 0.0
    %1276 = vmatprep.subr.mxu0 0.0
    %1277 = vmatpush1.msra.mxu0 0.0
    %1278 = vmatprep.subr.mxu0 0.0
    %1279 = vmatpush1.msra.mxu0 0.0
    %1280 = vmatprep.subr.mxu0 0.0
    %1281 = vmatpush1.msra.mxu0 0.0
    %1282 = vmatprep.subr.mxu0 0.0
    %1283 = vmatpush1.msra.mxu0 0.0
    %1284 = vmatprep.subr.mxu0 0.0
    %1285 = vmatpush1.msra.mxu0 0.0
    %1286 = vmatprep.subr.mxu0 0.0
    %1287 = vmatpush1.msra.mxu0 0.0
    %1288 = vmatprep.subr.mxu0 0.0
    %1289 = vmatpush1.msra.mxu0 0.0
    %1290 = vmatprep.subr.mxu0 0.0
    %1291 = vmatpush1.msra.mxu0 0.0
    %1292 = vmatprep.subr.mxu0 0.0
    %1293 = vmatpush1.msra.mxu0 0.0
    %1294 = vmatprep.subr.mxu0 0.0
    %1295 = vmatpush1.msra.mxu0 0.0
    %1296 = vmatprep.subr.mxu0 0.0
    %1297 = vmatpush1.msra.mxu0 0.0
    %1298 = vmatprep.subr.mxu0 0.0
    %1299 = vmatpush1.msra.mxu0 0.0
    %1300 = vmatprep.subr.mxu0 0.0
    %1301 = vmatpush1.msra.mxu0 0.0
    %1302 = vmatprep.subr.mxu0 0.0
    %1303 = vmatpush1.msra.mxu0 0.0
    %1304 = vmatprep.subr.mxu0 0.0
    %1305 = vmatpush1.msra.mxu0 0.0
    %1306 = vmatprep.subr.mxu0 0.0
    %1307 = vmatpush1.msra.mxu0 0.0
    %1308 = vmatprep.subr.mxu0 0.0
    %1309 = vmatpush1.msra.mxu0 0.0
    %1310 = vmatprep.subr.mxu0 0.0
    %1311 = vmatpush1.msra.mxu0 0.0
    %1312 = vmatprep.subr.mxu0 0.0
    %1313 = vmatpush1.msra.mxu0 0.0
    %1314 = vmatprep.subr.mxu0 0.0
    %1315 = vmatpush1.msra.mxu0 0.0
    %1316 = vmatprep.mubr.f32.mxu0 0.0
    %v1317 = vand.u32 %v943, 4294901760
    %1318 = vmatmul.mubr.f32.gmra.mrb[0].mxu0 %v1317
    %v1319 = vpop.f32.mrb[0].mxu0
    %v1320 = vadd.f32 %v1246, %v1319
    %v1321 = vpop.f32.mrb[0].mxu0
    %1322 = vdwg.mxu0
    %1323 = vmatprep.subr.mxu0 0.0
    %v1324 = vand.u32 %v947, 4294901760
    %1325 = vmatpush1.msra.mxu0 %v1324
    %1326 = vmatprep.subr.mxu0 0.0
    %1327 = vmatpush1.msra.mxu0 0.0
    %1328 = vmatprep.subr.mxu0 0.0
    %1329 = vmatpush1.msra.mxu0 0.0
    %1330 = vmatprep.subr.mxu0 0.0
    %1331 = vmatpush1.msra.mxu0 0.0
    %1332 = vmatprep.subr.mxu0 0.0
    %1333 = vmatpush1.msra.mxu0 0.0
    %1334 = vmatprep.subr.mxu0 0.0
    %1335 = vmatpush1.msra.mxu0 0.0
    %1336 = vmatprep.subr.mxu0 0.0
    %1337 = vmatpush1.msra.mxu0 0.0
    %1338 = vmatprep.subr.mxu0 0.0
    %1339 = vmatpush1.msra.mxu0 0.0
    %1340 = vmatprep.subr.mxu0 0.0
    %1341 = vmatpush1.msra.mxu0 0.0
    %1342 = vmatprep.subr.mxu0 0.0
    %1343 = vmatpush1.msra.mxu0 0.0
    %1344 = vmatprep.subr.mxu0 0.0
    %1345 = vmatpush1.msra.mxu0 0.0
    %1346 = vmatprep.subr.mxu0 0.0
    %1347 = vmatpush1.msra.mxu0 0.0
    %1348 = vmatprep.subr.mxu0 0.0
    %1349 = vmatpush1.msra.mxu0 0.0
    %1350 = vmatprep.subr.mxu0 0.0
    %1351 = vmatpush1.msra.mxu0 0.0
    %1352 = vmatprep.subr.mxu0 0.0
    %1353 = vmatpush1.msra.mxu0 0.0
    %1354 = vmatprep.subr.mxu0 0.0
    %1355 = vmatpush1.msra.mxu0 0.0
    %1356 = vmatprep.subr.mxu0 0.0
    %1357 = vmatpush1.msra.mxu0 0.0
    %1358 = vmatprep.subr.mxu0 0.0
    %1359 = vmatpush1.msra.mxu0 0.0
    %1360 = vmatprep.subr.mxu0 0.0
    %1361 = vmatpush1.msra.mxu0 0.0
    %1362 = vmatprep.subr.mxu0 0.0
    %1363 = vmatpush1.msra.mxu0 0.0
    %1364 = vmatprep.subr.mxu0 0.0
    %1365 = vmatpush1.msra.mxu0 0.0
    %1366 = vmatprep.subr.mxu0 0.0
    %1367 = vmatpush1.msra.mxu0 0.0
    %1368 = vmatprep.subr.mxu0 0.0
    %1369 = vmatpush1.msra.mxu0 0.0
    %1370 = vmatprep.subr.mxu0 0.0
    %1371 = vmatpush1.msra.mxu0 0.0
    %1372 = vmatprep.subr.mxu0 0.0
    %1373 = vmatpush1.msra.mxu0 0.0
    %1374 = vmatprep.subr.mxu0 0.0
    %1375 = vmatpush1.msra.mxu0 0.0
    %1376 = vmatprep.subr.mxu0 0.0
    %1377 = vmatpush1.msra.mxu0 0.0
    %1378 = vmatprep.subr.mxu0 0.0
    %1379 = vmatpush1.msra.mxu0 0.0
    %1380 = vmatprep.subr.mxu0 0.0
    %1381 = vmatpush1.msra.mxu0 0.0
    %1382 = vmatprep.subr.mxu0 0.0
    %1383 = vmatpush1.msra.mxu0 0.0
    %1384 = vmatprep.subr.mxu0 0.0
    %1385 = vmatpush1.msra.mxu0 0.0
    %1386 = vmatprep.subr.mxu0 0.0
    %1387 = vmatpush1.msra.mxu0 0.0
    %1388 = vmatprep.mubr.f32.mxu0 0.0
    %v1389 = vand.u32 %v943, 4294901760
    %1390 = vmatmul.mubr.f32.gmra.mrb[0].mxu0 %v1389
    %v1391 = vpop.f32.mrb[0].mxu0
    %v1392 = vadd.f32 %v1320, %v1391
    %v1393 = vpop.f32.mrb[0].mxu0
    %1394 = vdwg.mxu0
    %v1395 = vxor.u32 %v1392, 2147483648
    %v1396 = vmul.f32 %v1395, 1.442695
    %v1397 = vpow.pop %v1396
    %v1398 = vadd.f32 %v1397, 1.0
    %v1399 = vrcp.pop %v1398
    %v1400 = vmul.f32 1.0, %v1399
    %v1401 = vlaneseq
    %v1402 = vshrl.u32 %v1401, 7
    %v1403 = vsub.s32 0, %v1402
    %v1404 = vrot.slane %v1400, %v1403
    %1406 = vbcast.lane.b32.xlu0 %v1404, 256
    %v1407 = vpop.permute.xlu0 %1406
    %s1409 = sor.u32 256, 8
    %1410 = vbcast.lane.b32.xlu0 %v1404, %s1409
    %v1411 = vpop.permute.xlu0 %1410
    %s1413 = sor.u32 256, 16
    %1414 = vbcast.lane.b32.xlu0 %v1404, %s1413
    %v1415 = vpop.permute.xlu0 %1414
    %s1417 = sor.u32 256, 24
    %1418 = vbcast.lane.b32.xlu0 %v1404, %s1417
    %v1419 = vpop.permute.xlu0 %1418
    %v1420 = vlaneseq
    %v1421 = vshrl.u32 %v1420, 7
    %v1422 = vsub.s32 1, %v1421
    %v1423 = vrot.slane %v1400, %v1422
    %1425 = vbcast.lane.b32.xlu0 %v1423, 256
    %v1426 = vpop.permute.xlu0 %1425
    %s1428 = sor.u32 256, 8
    %1429 = vbcast.lane.b32.xlu0 %v1423, %s1428
    %v1430 = vpop.permute.xlu0 %1429
    %s1432 = sor.u32 256, 16
    %1433 = vbcast.lane.b32.xlu0 %v1423, %s1432
    %v1434 = vpop.permute.xlu0 %1433
    %s1436 = sor.u32 256, 24
    %1437 = vbcast.lane.b32.xlu0 %v1423, %s1436
    %v1438 = vpop.permute.xlu0 %1437
    %v1439 = vlaneseq
    %v1440 = vshrl.u32 %v1439, 7
    %v1441 = vsub.s32 2, %v1440
    %v1442 = vrot.slane %v1400, %v1441
    %1444 = vbcast.lane.b32.xlu0 %v1442, 256
    %v1445 = vpop.permute.xlu0 %1444
    %s1447 = sor.u32 256, 8
    %1448 = vbcast.lane.b32.xlu0 %v1442, %s1447
    %v1449 = vpop.permute.xlu0 %1448
    %s1451 = sor.u32 256, 16
    %1452 = vbcast.lane.b32.xlu0 %v1442, %s1451
    %v1453 = vpop.permute.xlu0 %1452
    %s1455 = sor.u32 256, 24
    %1456 = vbcast.lane.b32.xlu0 %v1442, %s1455
    %v1457 = vpop.permute.xlu0 %1456
    %v1458 = vlaneseq
    %v1459 = vshrl.u32 %v1458, 7
    %v1460 = vsub.s32 3, %v1459
    %v1461 = vrot.slane %v1400, %v1460
    %1463 = vbcast.lane.b32.xlu0 %v1461, 256
    %v1464 = vpop.permute.xlu0 %1463
    %s1466 = sor.u32 256, 8
    %1467 = vbcast.lane.b32.xlu0 %v1461, %s1466
    %v1468 = vpop.permute.xlu0 %1467
    %s1470 = sor.u32 256, 16
    %1471 = vbcast.lane.b32.xlu0 %v1461, %s1470
    %v1472 = vpop.permute.xlu0 %1471
    %s1474 = sor.u32 256, 24
    %1475 = vbcast.lane.b32.xlu0 %v1461, %s1474
    %v1476 = vpop.permute.xlu0 %1475
    %v1477 = vlaneseq
    %v1478 = vshrl.u32 %v1477, 7
    %v1479 = vsub.s32 4, %v1478
    %v1480 = vrot.slane %v1400, %v1479
    %1482 = vbcast.lane.b32.xlu0 %v1480, 256
    %v1483 = vpop.permute.xlu0 %1482
    %s1485 = sor.u32 256, 8
    %1486 = vbcast.lane.b32.xlu0 %v1480, %s1485
    %v1487 = vpop.permute.xlu0 %1486
    %s1489 = sor.u32 256, 16
    %1490 = vbcast.lane.b32.xlu0 %v1480, %s1489
    %v1491 = vpop.permute.xlu0 %1490
    %s1493 = sor.u32 256, 24
    %1494 = vbcast.lane.b32.xlu0 %v1480, %s1493
    %v1495 = vpop.permute.xlu0 %1494
    %v1496 = vlaneseq
    %v1497 = vshrl.u32 %v1496, 7
    %v1498 = vsub.s32 5, %v1497
    %v1499 = vrot.slane %v1400, %v1498
    %1501 = vbcast.lane.b32.xlu0 %v1499, 256
    %v1502 = vpop.permute.xlu0 %1501
    %s1504 = sor.u32 256, 8
    %1505 = vbcast.lane.b32.xlu0 %v1499, %s1504
    %v1506 = vpop.permute.xlu0 %1505
    %s1508 = sor.u32 256, 16
    %1509 = vbcast.lane.b32.xlu0 %v1499, %s1508
    %v1510 = vpop.permute.xlu0 %1509
    %s1512 = sor.u32 256, 24
    %1513 = vbcast.lane.b32.xlu0 %v1499, %s1512
    %v1514 = vpop.permute.xlu0 %1513
    %v1515 = vlaneseq
    %v1516 = vshrl.u32 %v1515, 7
    %v1517 = vsub.s32 6, %v1516
    %v1518 = vrot.slane %v1400, %v1517
    %1520 = vbcast.lane.b32.xlu0 %v1518, 256
    %v1521 = vpop.permute.xlu0 %1520
    %s1523 = sor.u32 256, 8
    %1524 = vbcast.lane.b32.xlu0 %v1518, %s1523
    %v1525 = vpop.permute.xlu0 %1524
    %s1527 = sor.u32 256, 16
    %1528 = vbcast.lane.b32.xlu0 %v1518, %s1527
    %v1529 = vpop.permute.xlu0 %1528
    %s1531 = sor.u32 256, 24
    %1532 = vbcast.lane.b32.xlu0 %v1518, %s1531
    %v1533 = vpop.permute.xlu0 %1532
    %v1534 = vlaneseq
    %v1535 = vshrl.u32 %v1534, 7
    %v1536 = vsub.s32 7, %v1535
    %v1537 = vrot.slane %v1400, %v1536
    %1539 = vbcast.lane.b32.xlu0 %v1537, 256
    %v1540 = vpop.permute.xlu0 %1539
    %s1542 = sor.u32 256, 8
    %1543 = vbcast.lane.b32.xlu0 %v1537, %s1542
    %v1544 = vpop.permute.xlu0 %1543
    %s1546 = sor.u32 256, 16
    %1547 = vbcast.lane.b32.xlu0 %v1537, %s1546
    %v1548 = vpop.permute.xlu0 %1547
    %s1550 = sor.u32 256, 24
    %1551 = vbcast.lane.b32.xlu0 %v1537, %s1550
    %v1552 = vpop.permute.xlu0 %1551
    %v1553 = vmul.f32 %v35, %v1407
    %v1554 = vmul.f32 %v36, %v1407
    %v1555 = vmul.f32 %v37, %v1411
    %v1556 = vmul.f32 %v38, %v1411
    %v1557 = vmul.f32 %v39, %v1415
    %v1558 = vmul.f32 %v40, %v1415
    %v1559 = vmul.f32 %v41, %v1419
    %v1560 = vmul.f32 %v42, %v1419
    %v1561 = vmul.f32 %v43, %v1426
    %v1562 = vmul.f32 %v44, %v1426
    %v1563 = vmul.f32 %v45, %v1430
    %v1564 = vmul.f32 %v46, %v1430
    %v1565 = vmul.f32 %v47, %v1434
    %v1566 = vmul.f32 %v48, %v1434
    %v1567 = vmul.f32 %v49, %v1438
    %v1568 = vmul.f32 %v50, %v1438
    %v1569 = vmul.f32 %v51, %v1445
    %v1570 = vmul.f32 %v52, %v1445
    %v1571 = vmul.f32 %v53, %v1449
    %v1572 = vmul.f32 %v54, %v1449
    %v1573 = vmul.f32 %v55, %v1453
    %v1574 = vmul.f32 %v56, %v1453
    %v1575 = vmul.f32 %v57, %v1457
    %v1576 = vmul.f32 %v58, %v1457
    %v1577 = vmul.f32 %v59, %v1464
    %v1578 = vmul.f32 %v60, %v1464
    %v1579 = vmul.f32 %v61, %v1468
    %v1580 = vmul.f32 %v62, %v1468
    %v1581 = vmul.f32 %v63, %v1472
    %v1582 = vmul.f32 %v64, %v1472
    %v1583 = vmul.f32 %v65, %v1476
    %v1584 = vmul.f32 %v66, %v1476
    %v1585 = vmul.f32 %v67, %v1483
    %v1586 = vmul.f32 %v68, %v1483
    %v1587 = vmul.f32 %v69, %v1487
    %v1588 = vmul.f32 %v70, %v1487
    %v1589 = vmul.f32 %v71, %v1491
    %v1590 = vmul.f32 %v72, %v1491
    %v1591 = vmul.f32 %v73, %v1495
    %v1592 = vmul.f32 %v74, %v1495
    %v1593 = vmul.f32 %v75, %v1502
    %v1594 = vmul.f32 %v76, %v1502
    %v1595 = vmul.f32 %v77, %v1506
    %v1596 = vmul.f32 %v78, %v1506
    %v1597 = vmul.f32 %v79, %v1510
    %v1598 = vmul.f32 %v80, %v1510
    %v1599 = vmul.f32 %v81, %v1514
    %v1600 = vmul.f32 %v82, %v1514
    %v1601 = vmul.f32 %v83, %v1521
    %v1602 = vmul.f32 %v84, %v1521
    %v1603 = vmul.f32 %v85, %v1525
    %v1604 = vmul.f32 %v86, %v1525
    %v1605 = vmul.f32 %v87, %v1529
    %v1606 = vmul.f32 %v88, %v1529
    %v1607 = vmul.f32 %v89, %v1533
    %v1608 = vmul.f32 %v90, %v1533
    %v1609 = vmul.f32 %v91, %v1540
    %v1610 = vmul.f32 %v92, %v1540
    %v1611 = vmul.f32 %v93, %v1544
    %v1612 = vmul.f32 %v94, %v1544
    %v1613 = vmul.f32 %v95, %v1548
    %v1614 = vmul.f32 %v96, %v1548
    %v1615 = vmul.f32 %v97, %v1552
    %v1616 = vmul.f32 %v98, %v1552
    %1617 = vst [vmem:[#allocation5] sm:$0xff] %v1553
    %1618 = vst [vmem:[#allocation5 + $0x8] sm:$0xff] %v1554
    %1619 = vst [vmem:[#allocation5 + $0x10] sm:$0xff] %v1555
    %1620 = vst [vmem:[#allocation5 + $0x18] sm:$0xff] %v1556
    %1621 = vst [vmem:[#allocation5 + $0x20] sm:$0xff] %v1557
    %1622 = vst [vmem:[#allocation5 + $0x28] sm:$0xff] %v1558
    %1623 = vst [vmem:[#allocation5 + $0x30] sm:$0xff] %v1559
    %1624 = vst [vmem:[#allocation5 + $0x38] sm:$0xff] %v1560
    %1625 = vst [vmem:[#allocation5 + $0x40] sm:$0xff] %v1561
    %1626 = vst [vmem:[#allocation5 + $0x48] sm:$0xff] %v1562
    %1627 = vst [vmem:[#allocation5 + $0x50] sm:$0xff] %v1563
    %1628 = vst [vmem:[#allocation5 + $0x58] sm:$0xff] %v1564
    %1629 = vst [vmem:[#allocation5 + $0x60] sm:$0xff] %v1565
    %1630 = vst [vmem:[#allocation5 + $0x68] sm:$0xff] %v1566
    %1631 = vst [vmem:[#allocation5 + $0x70] sm:$0xff] %v1567
    %1632 = vst [vmem:[#allocation5 + $0x78] sm:$0xff] %v1568
    %1633 = vst [vmem:[#allocation5 + $0x80] sm:$0xff] %v1569
    %1634 = vst [vmem:[#allocation5 + $0x88] sm:$0xff] %v1570
    %1635 = vst [vmem:[#allocation5 + $0x90] sm:$0xff] %v1571
    %1636 = vst [vmem:[#allocation5 + $0x98] sm:$0xff] %v1572
    %1637 = vst [vmem:[#allocation5 + $0xa0] sm:$0xff] %v1573
    %1638 = vst [vmem:[#allocation5 + $0xa8] sm:$0xff] %v1574
    %1639 = vst [vmem:[#allocation5 + $0xb0] sm:$0xff] %v1575
    %1640 = vst [vmem:[#allocation5 + $0xb8] sm:$0xff] %v1576
    %1641 = vst [vmem:[#allocation5 + $0xc0] sm:$0xff] %v1577
    %1642 = vst [vmem:[#allocation5 + $0xc8] sm:$0xff] %v1578
    %1643 = vst [vmem:[#allocation5 + $0xd0] sm:$0xff] %v1579
    %1644 = vst [vmem:[#allocation5 + $0xd8] sm:$0xff] %v1580
    %1645 = vst [vmem:[#allocation5 + $0xe0] sm:$0xff] %v1581
    %1646 = vst [vmem:[#allocation5 + $0xe8] sm:$0xff] %v1582
    %1647 = vst [vmem:[#allocation5 + $0xf0] sm:$0xff] %v1583
    %1648 = vst [vmem:[#allocation5 + $0xf8] sm:$0xff] %v1584
    %1649 = vst [vmem:[#allocation5 + $0x100] sm:$0xff] %v1585
    %1650 = vst [vmem:[#allocation5 + $0x108] sm:$0xff] %v1586
    %1651 = vst [vmem:[#allocation5 + $0x110] sm:$0xff] %v1587
    %1652 = vst [vmem:[#allocation5 + $0x118] sm:$0xff] %v1588
    %1653 = vst [vmem:[#allocation5 + $0x120] sm:$0xff] %v1589
    %1654 = vst [vmem:[#allocation5 + $0x128] sm:$0xff] %v1590
    %1655 = vst [vmem:[#allocation5 + $0x130] sm:$0xff] %v1591
    %1656 = vst [vmem:[#allocation5 + $0x138] sm:$0xff] %v1592
    %1657 = vst [vmem:[#allocation5 + $0x140] sm:$0xff] %v1593
    %1658 = vst [vmem:[#allocation5 + $0x148] sm:$0xff] %v1594
    %1659 = vst [vmem:[#allocation5 + $0x150] sm:$0xff] %v1595
    %1660 = vst [vmem:[#allocation5 + $0x158] sm:$0xff] %v1596
    %1661 = vst [vmem:[#allocation5 + $0x160] sm:$0xff] %v1597
    %1662 = vst [vmem:[#allocation5 + $0x168] sm:$0xff] %v1598
    %1663 = vst [vmem:[#allocation5 + $0x170] sm:$0xff] %v1599
    %1664 = vst [vmem:[#allocation5 + $0x178] sm:$0xff] %v1600
    %1665 = vst [vmem:[#allocation5 + $0x180] sm:$0xff] %v1601
    %1666 = vst [vmem:[#allocation5 + $0x188] sm:$0xff] %v1602
    %1667 = vst [vmem:[#allocation5 + $0x190] sm:$0xff] %v1603
    %1668 = vst [vmem:[#allocation5 + $0x198] sm:$0xff] %v1604
    %1669 = vst [vmem:[#allocation5 + $0x1a0] sm:$0xff] %v1605
    %1670 = vst [vmem:[#allocation5 + $0x1a8] sm:$0xff] %v1606
    %1671 = vst [vmem:[#allocation5 + $0x1b0] sm:$0xff] %v1607
    %1672 = vst [vmem:[#allocation5 + $0x1b8] sm:$0xff] %v1608
    %1673 = vst [vmem:[#allocation5 + $0x1c0] sm:$0xff] %v1609
    %1674 = vst [vmem:[#allocation5 + $0x1c8] sm:$0xff] %v1610
    %1675 = vst [vmem:[#allocation5 + $0x1d0] sm:$0xff] %v1611
    %1676 = vst [vmem:[#allocation5 + $0x1d8] sm:$0xff] %v1612
    %1677 = vst [vmem:[#allocation5 + $0x1e0] sm:$0xff] %v1613
    %1678 = vst [vmem:[#allocation5 + $0x1e8] sm:$0xff] %v1614
    %1679 = vst [vmem:[#allocation5 + $0x1f0] sm:$0xff] %v1615
    %1680 = vst [vmem:[#allocation5 + $0x1f8] sm:$0xff] %v1616
    // Predicated region
    $region26: #{tpu_custom_call.1} parent=1 // pred_check
      _
    $region27: #{tpu_custom_call.1} parent=1 // pred_check_branch
      %1682 = sbr.rel (0) target = $region29
    $region28: #{tpu_custom_call.1} parent=1 // pred_region
      %s1684 = ssub.s32 8192, 8192
      %1685 = vsyncadd [#allocation4], %s1684
      %s1686 = sshll.u32 [#allocation5], 4
      %s1687 = int_to_ptr.vmem [resolvable:$true] %s1686
      %1692 = dma.vmem_to_hbm [thread:$0]  %s1687, 8192, %s5, [#allocation4], 256, 256, 16
    $region29: #{tpu_custom_call.1} parent=1 // pred_fallthru
      _
    // Predicated region
    $region30: #{tpu_custom_call.1} parent=1 // pred_check
      _
    $region31: #{tpu_custom_call.1} parent=1 // pred_check_branch
      %1694 = sbr.rel (0) target = $region33
    $region32: #{tpu_custom_call.1} parent=1 // pred_region
      %1695 = dma.done [#allocation4], 8192
    $region33: #{tpu_custom_call.1} parent=1 // pred_fallthru
      _
    %1696 = vsyncpa [#allocation3], 1
    %1697 = vsyncpa [#allocation4], 1

</llo_original>
